<compile_context>
chip_gen: v5e
topology: v5e:2x2
jax: 0.10.0
libtpu: 0.0.40
codegen_flags: <defaults>
</compile_context>

<pallas_src>
import functools

import jax
import jax.numpy as jnp
from jax import lax
from jax.experimental import pallas as pl
from jax.experimental.pallas import tpu as pltpu


def _round_up(x, m):
    return (x + m - 1) // m * m


def _lstm_recurrence_kernel(xg_ref, whh_ref, h0_ref, c0_ref, out_ref,
                            h_sc, c_sc, *, chunk, last_steps, unroll):
    """One grid step = one (batch block, time chunk); recurrence runs inside.

    xg_ref : (T, Bb, 4*Hp)   precomputed x_t @ W_ih^T + bias (time-major stream)
    whh_ref: (Hp, 4*Hp)      recurrent weights (bf16/f32), single-buffered
    h0_ref : (1, Hp) f32     learnable init hidden (broadcast over batch)
    c0_ref : (1, Hp) f32     learnable init cell
    out_ref: (Bb, T, Hp) f32 batch-major output block (no wrapper transpose)
    h_sc, c_sc: (Bb, Hp) f32 state carried across time chunks
    """
    Hp = h_sc.shape[-1]

    # Fresh init at the first time chunk of every batch block.
    @pl.when(pl.program_id(1) == 0)
    def _():
        h_sc[...] = jnp.broadcast_to(h0_ref[...], h_sc.shape)
        c_sc[...] = jnp.broadcast_to(c0_ref[...], c_sc.shape)

    # Recurrent weight loaded once per chunk (hoisted off the time loop).
    whh = whh_ref[...]

    def sigmoid(x):
        # One EUP op (tanh) instead of exp + divide.
        return 0.5 * jnp.tanh(0.5 * x) + 0.5

    def step(t, carry):
        h_prev, c_prev = carry                    # values, no VMEM round trip
        gates = xg_ref[t].astype(jnp.float32) + jnp.dot(
            h_prev.astype(whh.dtype), whh, preferred_element_type=jnp.float32)
        # Gate boundaries are multiples of Hp (a multiple of 128 lanes): these
        # slices are whole-vreg selections, no XLU lane shuffles.
        i_g = sigmoid(gates[:, 0 * Hp:1 * Hp])
        f_g = sigmoid(gates[:, 1 * Hp:2 * Hp])
        g_g = jnp.tanh(gates[:, 2 * Hp:3 * Hp])
        o_g = sigmoid(gates[:, 3 * Hp:4 * Hp])
        c_new = f_g * c_prev + i_g * g_g
        h_new = o_g * jnp.tanh(c_new)
        # Batch-major, lane-dense store (Hp is a multiple of 128).
        out_ref[:, pl.ds(t, 1), :] = h_new[:, None, :].astype(out_ref.dtype)
        return (h_new, c_new)

    carry0 = (h_sc[...], c_sc[...])
    if last_steps == chunk:
        h_fin, c_fin = lax.fori_loop(0, chunk, step, carry0, unroll=unroll)
    else:
        # Skip the padded tail timesteps of the last chunk (dead matmul+EUP
        # work otherwise); dynamic trip count -> plain while-style loop.
        n_steps = jnp.where(pl.program_id(1) == pl.num_programs(1) - 1,
                            last_steps, chunk)
        h_fin, c_fin = lax.fori_loop(0, n_steps, step, carry0)
    h_sc[...] = h_fin
    c_sc[...] = c_fin


def lstm_forward(inp, w_ih, w_hh, b_ih, b_hh, hidden_params, cell_params,
                 *, matmul_dtype=jnp.bfloat16, xg_dtype=jnp.bfloat16,
                 time_chunk=32, batch_blocks=None):
    """
    inp:           (B, L, D_in) float32  (batch_first, like PyTorch forward)
    w_ih:          (4H, D_in)   PyTorch weight_ih_l0
    w_hh:          (4H, H)      PyTorch weight_hh_l0
    b_ih, b_hh:    (4H,)
    hidden_params: (1, 1, H)    learnable init hidden (layers*dirs = 1)
    cell_params:   (1, 1, H)    learnable init cell
    returns:       (B, L, H) float32
    """
    B, L, D_in = inp.shape
    H = w_hh.shape[1]
    Hp = _round_up(H, 128)

    # Batch sharding across TensorCores (v7x has 2 per chip). Only split when
    # the per-core block stays a multiple of 8 sublanes and >1 core exists.
    if batch_blocks is None:
        n_cores = getattr(jax.devices()[0], "num_cores", 1) or 1
        batch_blocks = 2 if (n_cores >= 2 and B >= 16 and B % 16 == 0) else 1
    Bb = B // batch_blocks

    # ---- 1) Hoisted input projection over all timesteps, produced directly in
    #         the gate-padded (4, Hp) layout (no activation re-pad pass).
    w_ih_g = jnp.pad(w_ih.reshape(4, H, D_in), ((0, 0), (0, Hp - H), (0, 0)))
    w_ih_g = w_ih_g.reshape(4 * Hp, D_in).astype(matmul_dtype)
    bias_g = jnp.pad((b_ih + b_hh).astype(jnp.float32).reshape(4, H),
                     ((0, 0), (0, Hp - H))).reshape(4 * Hp)
    x_tm = jnp.transpose(inp, (1, 0, 2)).astype(matmul_dtype)   # (L,B,D_in) small
    xg = (jnp.einsum('lbd,gd->lbg', x_tm, w_ih_g,
                     preferred_element_type=jnp.float32)
          + bias_g)                                             # (L, B, 4Hp) f32
    xg = xg.astype(xg_dtype)

    # ---- 2) Recurrent weight / init states, gate-padded and lane-aligned.
    #         Padded lanes stay exactly zero through the recurrence.
    whh = jnp.pad(jnp.transpose(w_hh).reshape(H, 4, H),
                  ((0, Hp - H), (0, 0), (0, Hp - H)))
    whh = whh.reshape(Hp, 4 * Hp).astype(matmul_dtype)
    h0 = jnp.pad(hidden_params[0].astype(jnp.float32), ((0, 0), (0, Hp - H)))
    c0 = jnp.pad(cell_params[0].astype(jnp.float32), ((0, 0), (0, Hp - H)))

    # ---- 3) Time chunking (chunk must be a sublane multiple when L > chunk).
    time_chunk = _round_up(max(int(time_chunk), 1), 8)
    T = L if L <= time_chunk else time_chunk
    Lp = _round_up(L, T)
    num_chunks = Lp // T
    last_steps = L - (num_chunks - 1) * T      # real steps in the final chunk
    if Lp != L:
        xg = jnp.pad(xg, ((0, Lp - L), (0, 0), (0, 0)))

    # Unroll sized against the 64-vreg budget: gates use ~ (Bb/8)*(4Hp/128)
    # vregs per unrolled iteration; cap unroll before it spills.
    gate_vregs = max(1, Bb // 8) * (4 * Hp // 128)
    if T <= 8:
        unroll = T
    elif gate_vregs <= 8:
        unroll = 8
    elif gate_vregs <= 16:
        unroll = 4
    else:
        unroll = 2

    # Explicit VMEM budget (scoped defaults ~16/32 MiB are far below physical).
    xg_b = jnp.dtype(xg_dtype).itemsize
    w_b = jnp.dtype(matmul_dtype).itemsize
    need = (2 * T * Bb * 4 * Hp * xg_b        # xg chunk, double-buffered
            + 2 * Bb * T * Hp * 4             # out chunk, double-buffered
            + Hp * 4 * Hp * w_b               # W_hh, single-buffered
            + 2 * Hp * 4                      # h0 / c0
            + 2 * Bb * Hp * 4)                # h / c scratch
    vmem_limit = int(min(max(2 * need + (4 << 20), 32 << 20), 100 << 20))

    kernel = functools.partial(_lstm_recurrence_kernel, chunk=T,
                               last_steps=last_steps, unroll=unroll)

    out = pl.pallas_call(
        kernel,
        out_shape=jax.ShapeDtypeStruct((B, Lp, Hp), jnp.float32),
        grid_spec=pltpu.PrefetchScalarGridSpec(
            num_scalar_prefetch=0,
            grid=(batch_blocks, num_chunks),
            in_specs=[
                # Streamed input-projection chunk (time-major).
                pl.BlockSpec((T, Bb, 4 * Hp), lambda bb, c: (c, bb, 0)),
                # Constant blocks: single-buffered (index map never changes).
                pl.BlockSpec((Hp, 4 * Hp), lambda bb, c: (0, 0),
                             pipeline_mode=pl.Buffered(1)),
                pl.BlockSpec((1, Hp), lambda bb, c: (0, 0),
                             pipeline_mode=pl.Buffered(1)),
                pl.BlockSpec((1, Hp), lambda bb, c: (0, 0),
                             pipeline_mode=pl.Buffered(1)),
            ],
            # Batch-major output written directly by the kernel.
            out_specs=pl.BlockSpec((Bb, T, Hp), lambda bb, c: (bb, c, 0)),
            scratch_shapes=[
                pltpu.VMEM((Bb, Hp), jnp.float32),   # h carry
                pltpu.VMEM((Bb, Hp), jnp.float32),   # c carry
            ],
        ),
        compiler_params=pltpu.CompilerParams(
            dimension_semantics=("parallel", "arbitrary"),
            vmem_limit_bytes=vmem_limit,
        ),
    )(xg, whh, h0, c0)

    return out[:, :L, :H]                                        # (B, L, H)


def _lstm_reference(inp, w_ih, w_hh, b_ih, b_hh, hidden_params, cell_params):
    """Pure-JAX reference mirroring torch.nn.LSTM (single layer, batch_first)."""
    B, L, _ = inp.shape
    H = w_hh.shape[1]
    h = jnp.broadcast_to(hidden_params[0], (B, H))
    c = jnp.broadcast_to(cell_params[0], (B, H))
    bias = b_ih + b_hh

    def step(carry, x_t):
        h, c = carry
        gates = x_t @ w_ih.T + h @ w_hh.T + bias
        i = jax.nn.sigmoid(gates[:, 0 * H:1 * H])
        f = jax.nn.sigmoid(gates[:, 1 * H:2 * H])
        g = jnp.tanh(gates[:, 2 * H:3 * H])
        o = jax.nn.sigmoid(gates[:, 3 * H:4 * H])
        c = f * c + i * g
        h = o * jnp.tanh(c)
        return (h, c), h

    (_, _), ys = jax.lax.scan(step, (h, c), jnp.transpose(inp, (1, 0, 2)))
    return jnp.transpose(ys, (1, 0, 2))


if __name__ == "__main__":
    # Small shapes consistent with forward(): BATCH_SIZE x LEN x H_DIM
    B, L, D_in, H = 2, 8, 32, 32

    key = jax.random.PRNGKey(0)
    ks = jax.random.split(key, 8)
    scale = 1.0 / jnp.sqrt(H)
    x = jax.random.normal(ks[0], (B, L, D_in), dtype=jnp.float32)
    w_ih = jax.random.uniform(ks[1], (4 * H, D_in), minval=-scale, maxval=scale)
    w_hh = jax.random.uniform(ks[2], (4 * H, H), minval=-scale, maxval=scale)
    b_ih = jax.random.uniform(ks[3], (4 * H,), minval=-scale, maxval=scale)
    b_hh = jax.random.uniform(ks[4], (4 * H,), minval=-scale, maxval=scale)
    # init_hidden default is torch.zeros, but the states are learnable
    # Parameters; use small nonzero values to exercise the init-state path.
    hidden_params = 0.1 * jax.random.normal(ks[5], (1, 1, H), dtype=jnp.float32)
    cell_params = 0.1 * jax.random.normal(ks[6], (1, 1, H), dtype=jnp.float32)

    ref = _lstm_reference(x, w_ih, w_hh, b_ih, b_hh, hidden_params, cell_params)

    # Full-precision path (tight check).
    out = lstm_forward(x, w_ih, w_hh, b_ih, b_hh, hidden_params, cell_params,
                       matmul_dtype=jnp.float32, xg_dtype=jnp.float32)
    out = jax.block_until_ready(out)
    assert out.shape == (B, L, H)
    assert jnp.allclose(out, ref, atol=5e-5, rtol=5e-5), (
        f"max abs err {jnp.max(jnp.abs(out - ref))}")

    # Default path: bf16 W_hh and bf16 streamed xg (MXU-native on v5e/v6e/v7x);
    # state / accumulation / nonlinearities stay f32.
    out_bf16 = lstm_forward(x, w_ih, w_hh, b_ih, b_hh, hidden_params,
                            cell_params)
    out_bf16 = jax.block_until_ready(out_bf16)
    assert jnp.allclose(out_bf16, ref, atol=1e-1, rtol=1e-1), (
        f"bf16 max abs err {jnp.max(jnp.abs(out_bf16 - ref))}")

    # Multi-chunk + ragged-tail path: L not a multiple of the time chunk
    # (exercises state carry across chunks and the dead-step skip).
    L2 = 20
    x2 = jax.random.normal(ks[7], (B, L2, D_in), dtype=jnp.float32)
    ref2 = _lstm_reference(x2, w_ih, w_hh, b_ih, b_hh, hidden_params,
                           cell_params)
    out2 = lstm_forward(x2, w_ih, w_hh, b_ih, b_hh, hidden_params, cell_params,
                        matmul_dtype=jnp.float32, xg_dtype=jnp.float32,
                        time_chunk=8)
    out2 = jax.block_until_ready(out2)
    assert out2.shape == (B, L2, H)
    assert jnp.allclose(out2, ref2, atol=5e-5, rtol=5e-5), (
        f"chunked max abs err {jnp.max(jnp.abs(out2 - ref2))}")

    print("KERNEL_OK")
</pallas_src>

<mosaic_0001>
module attributes {stable_mosaic.version = 11 : i64} {
  func.func @_lstm_recurrence_kernel(%arg0: i32, %arg1: i32, %arg2: memref<8x2x512xf32, #tpu.memory_space<vmem>>, %arg3: memref<128x512xf32, #tpu.memory_space<vmem>>, %arg4: memref<1x128xf32, #tpu.memory_space<vmem>>, %arg5: memref<1x128xf32, #tpu.memory_space<vmem>>, %arg6: memref<2x8x128xf32, #tpu.memory_space<vmem>>, %arg7: memref<2x128xf32, #tpu.memory_space<vmem>>, %arg8: memref<2x128xf32, #tpu.memory_space<vmem>>) attributes {dimension_semantics = [#tpu.dimension_semantics<parallel>, #tpu.dimension_semantics<arbitrary>], iteration_bounds = array<i64: 1, 1>, scalar_prefetch = 0 : i64, scratch_operands = 2 : i64, tpu.core_type = #tpu.core_type<tc>, window_params = [{transform_indices = @transform_0, window_bounds = array<i64: 8, 2, 512>}, {pipeline_mode = #tpu.pipeline_mode<synchronous>, transform_indices = @transform_1, window_bounds = array<i64: 128, 512>}, {pipeline_mode = #tpu.pipeline_mode<synchronous>, transform_indices = @transform_2, window_bounds = array<i64: 1, 128>}, {pipeline_mode = #tpu.pipeline_mode<synchronous>, transform_indices = @transform_3, window_bounds = array<i64: 1, 128>}, {transform_indices = @transform_4, window_bounds = array<i64: 2, 8, 128>}]} {
    %c0_i32 = arith.constant 0 : i32
    %0 = arith.cmpi eq, %arg1, %c0_i32 : i32
    %1 = arith.extui %0 : i1 to i32
    %c0_i32_0 = arith.constant 0 : i32
    %2 = arith.cmpi ne, %1, %c0_i32_0 : i32
    scf.if %2 {
      %c0_122 = arith.constant 0 : index
      %c0_123 = arith.constant 0 : index
      %320 = vector.load %arg4[%c0_122, %c0_123] : memref<1x128xf32, #tpu.memory_space<vmem>>, vector<1x128xf32>
      %321 = vector.shape_cast %320 : vector<1x128xf32> to vector<1x128xf32>
      %322 = vector.broadcast %321 : vector<1x128xf32> to vector<2x128xf32>
      %c0_124 = arith.constant 0 : index
      %c0_125 = arith.constant 0 : index
      %323 = vector.load %arg7[%c0_124, %c0_125] : memref<2x128xf32, #tpu.memory_space<vmem>>, vector<2x128xf32>
      tpu.vector_store %arg7[%c0_124, %c0_125], %322 {strides = array<i32>} : memref<2x128xf32, #tpu.memory_space<vmem>>, vector<2x128xf32>,
      %c0_126 = arith.constant 0 : index
      %c0_127 = arith.constant 0 : index
      %324 = vector.load %arg5[%c0_126, %c0_127] : memref<1x128xf32, #tpu.memory_space<vmem>>, vector<1x128xf32>
      %325 = vector.shape_cast %324 : vector<1x128xf32> to vector<1x128xf32>
      %326 = vector.broadcast %325 : vector<1x128xf32> to vector<2x128xf32>
      %c0_128 = arith.constant 0 : index
      %c0_129 = arith.constant 0 : index
      %327 = vector.load %arg8[%c0_128, %c0_129] : memref<2x128xf32, #tpu.memory_space<vmem>>, vector<2x128xf32>
      tpu.vector_store %arg8[%c0_128, %c0_129], %326 {strides = array<i32>} : memref<2x128xf32, #tpu.memory_space<vmem>>, vector<2x128xf32>,
    } else {
    }
    %c0 = arith.constant 0 : index
    %c0_1 = arith.constant 0 : index
    %3 = vector.load %arg3[%c0, %c0_1] : memref<128x512xf32, #tpu.memory_space<vmem>>, vector<128x512xf32>
    %c0_2 = arith.constant 0 : index
    %c0_3 = arith.constant 0 : index
    %4 = vector.load %arg7[%c0_2, %c0_3] : memref<2x128xf32, #tpu.memory_space<vmem>>, vector<2x128xf32>
    %c0_4 = arith.constant 0 : index
    %c0_5 = arith.constant 0 : index
    %5 = vector.load %arg8[%c0_4, %c0_5] : memref<2x128xf32, #tpu.memory_space<vmem>>, vector<2x128xf32>
    %c0_i32_6 = arith.constant 0 : i32
    %6 = arith.index_cast %c0_i32_6 : i32 to index
    %c0_7 = arith.constant 0 : index
    %c0_8 = arith.constant 0 : index
    %7 = vector.load %arg2[%6, %c0_7, %c0_8] : memref<8x2x512xf32, #tpu.memory_space<vmem>>, vector<1x2x512xf32>
    %8 = vector.shape_cast %7 : vector<1x2x512xf32> to vector<2x512xf32>
    %cst = arith.constant dense<0.000000e+00> : vector<2x512xf32>
    %9 = tpu.matmul %4, %3, %cst {dimension_numbers = #tpu.dot_dimension_numbers<[1], [0], [0], [1], [0, 0, 1, 1], [], []>} : vector<2x128xf32>, vector<128x512xf32>, vector<2x512xf32> -> vector<2x512xf32>
    %10 = arith.addf %8, %9 : vector<2x512xf32>
    %11 = vector.extract_strided_slice %10 {offsets = [0, 0], sizes = [2, 128], strides = [1, 1]} : vector<2x512xf32> to vector<2x128xf32>
    %cst_9 = arith.constant 5.000000e-01 : f32
    %12 = vector.broadcast %cst_9 : f32 to vector<2x128xf32>
    %13 = arith.mulf %12, %11 : vector<2x128xf32>
    %14 = math.tanh %13 : vector<2x128xf32>
    %cst_10 = arith.constant 5.000000e-01 : f32
    %15 = vector.broadcast %cst_10 : f32 to vector<2x128xf32>
    %16 = arith.mulf %15, %14 : vector<2x128xf32>
    %cst_11 = arith.constant 5.000000e-01 : f32
    %17 = vector.broadcast %cst_11 : f32 to vector<2x128xf32>
    %18 = arith.addf %16, %17 : vector<2x128xf32>
    %19 = vector.extract_strided_slice %10 {offsets = [0, 128], sizes = [2, 128], strides = [1, 1]} : vector<2x512xf32> to vector<2x128xf32>
    %cst_12 = arith.constant 5.000000e-01 : f32
    %20 = vector.broadcast %cst_12 : f32 to vector<2x128xf32>
    %21 = arith.mulf %20, %19 : vector<2x128xf32>
    %22 = math.tanh %21 : vector<2x128xf32>
    %cst_13 = arith.constant 5.000000e-01 : f32
    %23 = vector.broadcast %cst_13 : f32 to vector<2x128xf32>
    %24 = arith.mulf %23, %22 : vector<2x128xf32>
    %cst_14 = arith.constant 5.000000e-01 : f32
    %25 = vector.broadcast %cst_14 : f32 to vector<2x128xf32>
    %26 = arith.addf %24, %25 : vector<2x128xf32>
    %27 = vector.extract_strided_slice %10 {offsets = [0, 256], sizes = [2, 128], strides = [1, 1]} : vector<2x512xf32> to vector<2x128xf32>
    %28 = math.tanh %27 : vector<2x128xf32>
    %29 = vector.extract_strided_slice %10 {offsets = [0, 384], sizes = [2, 128], strides = [1, 1]} : vector<2x512xf32> to vector<2x128xf32>
    %cst_15 = arith.constant 5.000000e-01 : f32
    %30 = vector.broadcast %cst_15 : f32 to vector<2x128xf32>
    %31 = arith.mulf %30, %29 : vector<2x128xf32>
    %32 = math.tanh %31 : vector<2x128xf32>
    %cst_16 = arith.constant 5.000000e-01 : f32
    %33 = vector.broadcast %cst_16 : f32 to vector<2x128xf32>
    %34 = arith.mulf %33, %32 : vector<2x128xf32>
    %cst_17 = arith.constant 5.000000e-01 : f32
    %35 = vector.broadcast %cst_17 : f32 to vector<2x128xf32>
    %36 = arith.addf %34, %35 : vector<2x128xf32>
    %37 = arith.mulf %26, %5 : vector<2x128xf32>
    %38 = arith.mulf %18, %28 : vector<2x128xf32>
    %39 = arith.addf %37, %38 : vector<2x128xf32>
    %40 = math.tanh %39 : vector<2x128xf32>
    %41 = arith.mulf %36, %40 : vector<2x128xf32>
    %42 = vector.shape_cast %41 : vector<2x128xf32> to vector<2x1x128xf32>
    %c0_18 = arith.constant 0 : index
    %43 = arith.index_cast %c0_i32_6 : i32 to index
    %c0_19 = arith.constant 0 : index
    %44 = vector.load %arg6[%c0_18, %43, %c0_19] : memref<2x8x128xf32, #tpu.memory_space<vmem>>, vector<2x1x128xf32>
    tpu.vector_store %arg6[%c0_18, %43, %c0_19], %42 {strides = array<i32>} : memref<2x8x128xf32, #tpu.memory_space<vmem>>, vector<2x1x128xf32>,
    %c1_i32 = arith.constant 1 : i32
    %45 = arith.index_cast %c1_i32 : i32 to index
    %c0_20 = arith.constant 0 : index
    %c0_21 = arith.constant 0 : index
    %46 = vector.load %arg2[%45, %c0_20, %c0_21] : memref<8x2x512xf32, #tpu.memory_space<vmem>>, vector<1x2x512xf32>
    %47 = vector.shape_cast %46 : vector<1x2x512xf32> to vector<2x512xf32>
    %cst_22 = arith.constant dense<0.000000e+00> : vector<2x512xf32>
    %48 = tpu.matmul %41, %3, %cst_22 {dimension_numbers = #tpu.dot_dimension_numbers<[1], [0], [0], [1], [0, 0, 1, 1], [], []>} : vector<2x128xf32>, vector<128x512xf32>, vector<2x512xf32> -> vector<2x512xf32>
    %49 = arith.addf %47, %48 : vector<2x512xf32>
    %50 = vector.extract_strided_slice %49 {offsets = [0, 0], sizes = [2, 128], strides = [1, 1]} : vector<2x512xf32> to vector<2x128xf32>
    %cst_23 = arith.constant 5.000000e-01 : f32
    %51 = vector.broadcast %cst_23 : f32 to vector<2x128xf32>
    %52 = arith.mulf %51, %50 : vector<2x128xf32>
    %53 = math.tanh %52 : vector<2x128xf32>
    %cst_24 = arith.constant 5.000000e-01 : f32
    %54 = vector.broadcast %cst_24 : f32 to vector<2x128xf32>
    %55 = arith.mulf %54, %53 : vector<2x128xf32>
    %cst_25 = arith.constant 5.000000e-01 : f32
    %56 = vector.broadcast %cst_25 : f32 to vector<2x128xf32>
    %57 = arith.addf %55, %56 : vector<2x128xf32>
    %58 = vector.extract_strided_slice %49 {offsets = [0, 128], sizes = [2, 128], strides = [1, 1]} : vector<2x512xf32> to vector<2x128xf32>
    %cst_26 = arith.constant 5.000000e-01 : f32
    %59 = vector.broadcast %cst_26 : f32 to vector<2x128xf32>
    %60 = arith.mulf %59, %58 : vector<2x128xf32>
    %61 = math.tanh %60 : vector<2x128xf32>
    %cst_27 = arith.constant 5.000000e-01 : f32
    %62 = vector.broadcast %cst_27 : f32 to vector<2x128xf32>
    %63 = arith.mulf %62, %61 : vector<2x128xf32>
    %cst_28 = arith.constant 5.000000e-01 : f32
    %64 = vector.broadcast %cst_28 : f32 to vector<2x128xf32>
    %65 = arith.addf %63, %64 : vector<2x128xf32>
    %66 = vector.extract_strided_slice %49 {offsets = [0, 256], sizes = [2, 128], strides = [1, 1]} : vector<2x512xf32> to vector<2x128xf32>
    %67 = math.tanh %66 : vector<2x128xf32>
    %68 = vector.extract_strided_slice %49 {offsets = [0, 384], sizes = [2, 128], strides = [1, 1]} : vector<2x512xf32> to vector<2x128xf32>
    %cst_29 = arith.constant 5.000000e-01 : f32
    %69 = vector.broadcast %cst_29 : f32 to vector<2x128xf32>
    %70 = arith.mulf %69, %68 : vector<2x128xf32>
    %71 = math.tanh %70 : vector<2x128xf32>
    %cst_30 = arith.constant 5.000000e-01 : f32
    %72 = vector.broadcast %cst_30 : f32 to vector<2x128xf32>
    %73 = arith.mulf %72, %71 : vector<2x128xf32>
    %cst_31 = arith.constant 5.000000e-01 : f32
    %74 = vector.broadcast %cst_31 : f32 to vector<2x128xf32>
    %75 = arith.addf %73, %74 : vector<2x128xf32>
    %76 = arith.mulf %65, %39 : vector<2x128xf32>
    %77 = arith.mulf %57, %67 : vector<2x128xf32>
    %78 = arith.addf %76, %77 : vector<2x128xf32>
    %79 = math.tanh %78 : vector<2x128xf32>
    %80 = arith.mulf %75, %79 : vector<2x128xf32>
    %81 = vector.shape_cast %80 : vector<2x128xf32> to vector<2x1x128xf32>
    %c0_32 = arith.constant 0 : index
    %82 = arith.index_cast %c1_i32 : i32 to index
    %c0_33 = arith.constant 0 : index
    %83 = vector.load %arg6[%c0_32, %82, %c0_33] : memref<2x8x128xf32, #tpu.memory_space<vmem>>, vector<2x1x128xf32>
    tpu.vector_store %arg6[%c0_32, %82, %c0_33], %81 {strides = array<i32>} : memref<2x8x128xf32, #tpu.memory_space<vmem>>, vector<2x1x128xf32>,
    %c2_i32 = arith.constant 2 : i32
    %84 = arith.index_cast %c2_i32 : i32 to index
    %c0_34 = arith.constant 0 : index
    %c0_35 = arith.constant 0 : index
    %85 = vector.load %arg2[%84, %c0_34, %c0_35] : memref<8x2x512xf32, #tpu.memory_space<vmem>>, vector<1x2x512xf32>
    %86 = vector.shape_cast %85 : vector<1x2x512xf32> to vector<2x512xf32>
    %cst_36 = arith.constant dense<0.000000e+00> : vector<2x512xf32>
    %87 = tpu.matmul %80, %3, %cst_36 {dimension_numbers = #tpu.dot_dimension_numbers<[1], [0], [0], [1], [0, 0, 1, 1], [], []>} : vector<2x128xf32>, vector<128x512xf32>, vector<2x512xf32> -> vector<2x512xf32>
    %88 = arith.addf %86, %87 : vector<2x512xf32>
    %89 = vector.extract_strided_slice %88 {offsets = [0, 0], sizes = [2, 128], strides = [1, 1]} : vector<2x512xf32> to vector<2x128xf32>
    %cst_37 = arith.constant 5.000000e-01 : f32
    %90 = vector.broadcast %cst_37 : f32 to vector<2x128xf32>
    %91 = arith.mulf %90, %89 : vector<2x128xf32>
    %92 = math.tanh %91 : vector<2x128xf32>
    %cst_38 = arith.constant 5.000000e-01 : f32
    %93 = vector.broadcast %cst_38 : f32 to vector<2x128xf32>
    %94 = arith.mulf %93, %92 : vector<2x128xf32>
    %cst_39 = arith.constant 5.000000e-01 : f32
    %95 = vector.broadcast %cst_39 : f32 to vector<2x128xf32>
    %96 = arith.addf %94, %95 : vector<2x128xf32>
    %97 = vector.extract_strided_slice %88 {offsets = [0, 128], sizes = [2, 128], strides = [1, 1]} : vector<2x512xf32> to vector<2x128xf32>
    %cst_40 = arith.constant 5.000000e-01 : f32
    %98 = vector.broadcast %cst_40 : f32 to vector<2x128xf32>
    %99 = arith.mulf %98, %97 : vector<2x128xf32>
    %100 = math.tanh %99 : vector<2x128xf32>
    %cst_41 = arith.constant 5.000000e-01 : f32
    %101 = vector.broadcast %cst_41 : f32 to vector<2x128xf32>
    %102 = arith.mulf %101, %100 : vector<2x128xf32>
    %cst_42 = arith.constant 5.000000e-01 : f32
    %103 = vector.broadcast %cst_42 : f32 to vector<2x128xf32>
    %104 = arith.addf %102, %103 : vector<2x128xf32>
    %105 = vector.extract_strided_slice %88 {offsets = [0, 256], sizes = [2, 128], strides = [1, 1]} : vector<2x512xf32> to vector<2x128xf32>
    %106 = math.tanh %105 : vector<2x128xf32>
    %107 = vector.extract_strided_slice %88 {offsets = [0, 384], sizes = [2, 128], strides = [1, 1]} : vector<2x512xf32> to vector<2x128xf32>
    %cst_43 = arith.constant 5.000000e-01 : f32
    %108 = vector.broadcast %cst_43 : f32 to vector<2x128xf32>
    %109 = arith.mulf %108, %107 : vector<2x128xf32>
    %110 = math.tanh %109 : vector<2x128xf32>
    %cst_44 = arith.constant 5.000000e-01 : f32
    %111 = vector.broadcast %cst_44 : f32 to vector<2x128xf32>
    %112 = arith.mulf %111, %110 : vector<2x128xf32>
    %cst_45 = arith.constant 5.000000e-01 : f32
    %113 = vector.broadcast %cst_45 : f32 to vector<2x128xf32>
    %114 = arith.addf %112, %113 : vector<2x128xf32>
    %115 = arith.mulf %104, %78 : vector<2x128xf32>
    %116 = arith.mulf %96, %106 : vector<2x128xf32>
    %117 = arith.addf %115, %116 : vector<2x128xf32>
    %118 = math.tanh %117 : vector<2x128xf32>
    %119 = arith.mulf %114, %118 : vector<2x128xf32>
    %120 = vector.shape_cast %119 : vector<2x128xf32> to vector<2x1x128xf32>
    %c0_46 = arith.constant 0 : index
    %121 = arith.index_cast %c2_i32 : i32 to index
    %c0_47 = arith.constant 0 : index
    %122 = vector.load %arg6[%c0_46, %121, %c0_47] : memref<2x8x128xf32, #tpu.memory_space<vmem>>, vector<2x1x128xf32>
    tpu.vector_store %arg6[%c0_46, %121, %c0_47], %120 {strides = array<i32>} : memref<2x8x128xf32, #tpu.memory_space<vmem>>, vector<2x1x128xf32>,
    %c3_i32 = arith.constant 3 : i32
    %123 = arith.index_cast %c3_i32 : i32 to index
    %c0_48 = arith.constant 0 : index
    %c0_49 = arith.constant 0 : index
    %124 = vector.load %arg2[%123, %c0_48, %c0_49] : memref<8x2x512xf32, #tpu.memory_space<vmem>>, vector<1x2x512xf32>
    %125 = vector.shape_cast %124 : vector<1x2x512xf32> to vector<2x512xf32>
    %cst_50 = arith.constant dense<0.000000e+00> : vector<2x512xf32>
    %126 = tpu.matmul %119, %3, %cst_50 {dimension_numbers = #tpu.dot_dimension_numbers<[1], [0], [0], [1], [0, 0, 1, 1], [], []>} : vector<2x128xf32>, vector<128x512xf32>, vector<2x512xf32> -> vector<2x512xf32>
    %127 = arith.addf %125, %126 : vector<2x512xf32>
    %128 = vector.extract_strided_slice %127 {offsets = [0, 0], sizes = [2, 128], strides = [1, 1]} : vector<2x512xf32> to vector<2x128xf32>
    %cst_51 = arith.constant 5.000000e-01 : f32
    %129 = vector.broadcast %cst_51 : f32 to vector<2x128xf32>
    %130 = arith.mulf %129, %128 : vector<2x128xf32>
    %131 = math.tanh %130 : vector<2x128xf32>
    %cst_52 = arith.constant 5.000000e-01 : f32
    %132 = vector.broadcast %cst_52 : f32 to vector<2x128xf32>
    %133 = arith.mulf %132, %131 : vector<2x128xf32>
    %cst_53 = arith.constant 5.000000e-01 : f32
    %134 = vector.broadcast %cst_53 : f32 to vector<2x128xf32>
    %135 = arith.addf %133, %134 : vector<2x128xf32>
    %136 = vector.extract_strided_slice %127 {offsets = [0, 128], sizes = [2, 128], strides = [1, 1]} : vector<2x512xf32> to vector<2x128xf32>
    %cst_54 = arith.constant 5.000000e-01 : f32
    %137 = vector.broadcast %cst_54 : f32 to vector<2x128xf32>
    %138 = arith.mulf %137, %136 : vector<2x128xf32>
    %139 = math.tanh %138 : vector<2x128xf32>
    %cst_55 = arith.constant 5.000000e-01 : f32
    %140 = vector.broadcast %cst_55 : f32 to vector<2x128xf32>
    %141 = arith.mulf %140, %139 : vector<2x128xf32>
    %cst_56 = arith.constant 5.000000e-01 : f32
    %142 = vector.broadcast %cst_56 : f32 to vector<2x128xf32>
    %143 = arith.addf %141, %142 : vector<2x128xf32>
    %144 = vector.extract_strided_slice %127 {offsets = [0, 256], sizes = [2, 128], strides = [1, 1]} : vector<2x512xf32> to vector<2x128xf32>
    %145 = math.tanh %144 : vector<2x128xf32>
    %146 = vector.extract_strided_slice %127 {offsets = [0, 384], sizes = [2, 128], strides = [1, 1]} : vector<2x512xf32> to vector<2x128xf32>
    %cst_57 = arith.constant 5.000000e-01 : f32
    %147 = vector.broadcast %cst_57 : f32 to vector<2x128xf32>
    %148 = arith.mulf %147, %146 : vector<2x128xf32>
    %149 = math.tanh %148 : vector<2x128xf32>
    %cst_58 = arith.constant 5.000000e-01 : f32
    %150 = vector.broadcast %cst_58 : f32 to vector<2x128xf32>
    %151 = arith.mulf %150, %149 : vector<2x128xf32>
    %cst_59 = arith.constant 5.000000e-01 : f32
    %152 = vector.broadcast %cst_59 : f32 to vector<2x128xf32>
    %153 = arith.addf %151, %152 : vector<2x128xf32>
    %154 = arith.mulf %143, %117 : vector<2x128xf32>
    %155 = arith.mulf %135, %145 : vector<2x128xf32>
    %156 = arith.addf %154, %155 : vector<2x128xf32>
    %157 = math.tanh %156 : vector<2x128xf32>
    %158 = arith.mulf %153, %157 : vector<2x128xf32>
    %159 = vector.shape_cast %158 : vector<2x128xf32> to vector<2x1x128xf32>
    %c0_60 = arith.constant 0 : index
    %160 = arith.index_cast %c3_i32 : i32 to index
    %c0_61 = arith.constant 0 : index
    %161 = vector.load %arg6[%c0_60, %160, %c0_61] : memref<2x8x128xf32, #tpu.memory_space<vmem>>, vector<2x1x128xf32>
    tpu.vector_store %arg6[%c0_60, %160, %c0_61], %159 {strides = array<i32>} : memref<2x8x128xf32, #tpu.memory_space<vmem>>, vector<2x1x128xf32>,
    %c4_i32 = arith.constant 4 : i32
    %162 = arith.index_cast %c4_i32 : i32 to index
    %c0_62 = arith.constant 0 : index
    %c0_63 = arith.constant 0 : index
    %163 = vector.load %arg2[%162, %c0_62, %c0_63] : memref<8x2x512xf32, #tpu.memory_space<vmem>>, vector<1x2x512xf32>
    %164 = vector.shape_cast %163 : vector<1x2x512xf32> to vector<2x512xf32>
    %cst_64 = arith.constant dense<0.000000e+00> : vector<2x512xf32>
    %165 = tpu.matmul %158, %3, %cst_64 {dimension_numbers = #tpu.dot_dimension_numbers<[1], [0], [0], [1], [0, 0, 1, 1], [], []>} : vector<2x128xf32>, vector<128x512xf32>, vector<2x512xf32> -> vector<2x512xf32>
    %166 = arith.addf %164, %165 : vector<2x512xf32>
    %167 = vector.extract_strided_slice %166 {offsets = [0, 0], sizes = [2, 128], strides = [1, 1]} : vector<2x512xf32> to vector<2x128xf32>
    %cst_65 = arith.constant 5.000000e-01 : f32
    %168 = vector.broadcast %cst_65 : f32 to vector<2x128xf32>
    %169 = arith.mulf %168, %167 : vector<2x128xf32>
    %170 = math.tanh %169 : vector<2x128xf32>
    %cst_66 = arith.constant 5.000000e-01 : f32
    %171 = vector.broadcast %cst_66 : f32 to vector<2x128xf32>
    %172 = arith.mulf %171, %170 : vector<2x128xf32>
    %cst_67 = arith.constant 5.000000e-01 : f32
    %173 = vector.broadcast %cst_67 : f32 to vector<2x128xf32>
    %174 = arith.addf %172, %173 : vector<2x128xf32>
    %175 = vector.extract_strided_slice %166 {offsets = [0, 128], sizes = [2, 128], strides = [1, 1]} : vector<2x512xf32> to vector<2x128xf32>
    %cst_68 = arith.constant 5.000000e-01 : f32
    %176 = vector.broadcast %cst_68 : f32 to vector<2x128xf32>
    %177 = arith.mulf %176, %175 : vector<2x128xf32>
    %178 = math.tanh %177 : vector<2x128xf32>
    %cst_69 = arith.constant 5.000000e-01 : f32
    %179 = vector.broadcast %cst_69 : f32 to vector<2x128xf32>
    %180 = arith.mulf %179, %178 : vector<2x128xf32>
    %cst_70 = arith.constant 5.000000e-01 : f32
    %181 = vector.broadcast %cst_70 : f32 to vector<2x128xf32>
    %182 = arith.addf %180, %181 : vector<2x128xf32>
    %183 = vector.extract_strided_slice %166 {offsets = [0, 256], sizes = [2, 128], strides = [1, 1]} : vector<2x512xf32> to vector<2x128xf32>
    %184 = math.tanh %183 : vector<2x128xf32>
    %185 = vector.extract_strided_slice %166 {offsets = [0, 384], sizes = [2, 128], strides = [1, 1]} : vector<2x512xf32> to vector<2x128xf32>
    %cst_71 = arith.constant 5.000000e-01 : f32
    %186 = vector.broadcast %cst_71 : f32 to vector<2x128xf32>
    %187 = arith.mulf %186, %185 : vector<2x128xf32>
    %188 = math.tanh %187 : vector<2x128xf32>
    %cst_72 = arith.constant 5.000000e-01 : f32
    %189 = vector.broadcast %cst_72 : f32 to vector<2x128xf32>
    %190 = arith.mulf %189, %188 : vector<2x128xf32>
    %cst_73 = arith.constant 5.000000e-01 : f32
    %191 = vector.broadcast %cst_73 : f32 to vector<2x128xf32>
    %192 = arith.addf %190, %191 : vector<2x128xf32>
    %193 = arith.mulf %182, %156 : vector<2x128xf32>
    %194 = arith.mulf %174, %184 : vector<2x128xf32>
    %195 = arith.addf %193, %194 : vector<2x128xf32>
    %196 = math.tanh %195 : vector<2x128xf32>
    %197 = arith.mulf %192, %196 : vector<2x128xf32>
    %198 = vector.shape_cast %197 : vector<2x128xf32> to vector<2x1x128xf32>
    %c0_74 = arith.constant 0 : index
    %199 = arith.index_cast %c4_i32 : i32 to index
    %c0_75 = arith.constant 0 : index
    %200 = vector.load %arg6[%c0_74, %199, %c0_75] : memref<2x8x128xf32, #tpu.memory_space<vmem>>, vector<2x1x128xf32>
    tpu.vector_store %arg6[%c0_74, %199, %c0_75], %198 {strides = array<i32>} : memref<2x8x128xf32, #tpu.memory_space<vmem>>, vector<2x1x128xf32>,
    %c5_i32 = arith.constant 5 : i32
    %201 = arith.index_cast %c5_i32 : i32 to index
    %c0_76 = arith.constant 0 : index
    %c0_77 = arith.constant 0 : index
    %202 = vector.load %arg2[%201, %c0_76, %c0_77] : memref<8x2x512xf32, #tpu.memory_space<vmem>>, vector<1x2x512xf32>
    %203 = vector.shape_cast %202 : vector<1x2x512xf32> to vector<2x512xf32>
    %cst_78 = arith.constant dense<0.000000e+00> : vector<2x512xf32>
    %204 = tpu.matmul %197, %3, %cst_78 {dimension_numbers = #tpu.dot_dimension_numbers<[1], [0], [0], [1], [0, 0, 1, 1], [], []>} : vector<2x128xf32>, vector<128x512xf32>, vector<2x512xf32> -> vector<2x512xf32>
    %205 = arith.addf %203, %204 : vector<2x512xf32>
    %206 = vector.extract_strided_slice %205 {offsets = [0, 0], sizes = [2, 128], strides = [1, 1]} : vector<2x512xf32> to vector<2x128xf32>
    %cst_79 = arith.constant 5.000000e-01 : f32
    %207 = vector.broadcast %cst_79 : f32 to vector<2x128xf32>
    %208 = arith.mulf %207, %206 : vector<2x128xf32>
    %209 = math.tanh %208 : vector<2x128xf32>
    %cst_80 = arith.constant 5.000000e-01 : f32
    %210 = vector.broadcast %cst_80 : f32 to vector<2x128xf32>
    %211 = arith.mulf %210, %209 : vector<2x128xf32>
    %cst_81 = arith.constant 5.000000e-01 : f32
    %212 = vector.broadcast %cst_81 : f32 to vector<2x128xf32>
    %213 = arith.addf %211, %212 : vector<2x128xf32>
    %214 = vector.extract_strided_slice %205 {offsets = [0, 128], sizes = [2, 128], strides = [1, 1]} : vector<2x512xf32> to vector<2x128xf32>
    %cst_82 = arith.constant 5.000000e-01 : f32
    %215 = vector.broadcast %cst_82 : f32 to vector<2x128xf32>
    %216 = arith.mulf %215, %214 : vector<2x128xf32>
    %217 = math.tanh %216 : vector<2x128xf32>
    %cst_83 = arith.constant 5.000000e-01 : f32
    %218 = vector.broadcast %cst_83 : f32 to vector<2x128xf32>
    %219 = arith.mulf %218, %217 : vector<2x128xf32>
    %cst_84 = arith.constant 5.000000e-01 : f32
    %220 = vector.broadcast %cst_84 : f32 to vector<2x128xf32>
    %221 = arith.addf %219, %220 : vector<2x128xf32>
    %222 = vector.extract_strided_slice %205 {offsets = [0, 256], sizes = [2, 128], strides = [1, 1]} : vector<2x512xf32> to vector<2x128xf32>
    %223 = math.tanh %222 : vector<2x128xf32>
    %224 = vector.extract_strided_slice %205 {offsets = [0, 384], sizes = [2, 128], strides = [1, 1]} : vector<2x512xf32> to vector<2x128xf32>
    %cst_85 = arith.constant 5.000000e-01 : f32
    %225 = vector.broadcast %cst_85 : f32 to vector<2x128xf32>
    %226 = arith.mulf %225, %224 : vector<2x128xf32>
    %227 = math.tanh %226 : vector<2x128xf32>
    %cst_86 = arith.constant 5.000000e-01 : f32
    %228 = vector.broadcast %cst_86 : f32 to vector<2x128xf32>
    %229 = arith.mulf %228, %227 : vector<2x128xf32>
    %cst_87 = arith.constant 5.000000e-01 : f32
    %230 = vector.broadcast %cst_87 : f32 to vector<2x128xf32>
    %231 = arith.addf %229, %230 : vector<2x128xf32>
    %232 = arith.mulf %221, %195 : vector<2x128xf32>
    %233 = arith.mulf %213, %223 : vector<2x128xf32>
    %234 = arith.addf %232, %233 : vector<2x128xf32>
    %235 = math.tanh %234 : vector<2x128xf32>
    %236 = arith.mulf %231, %235 : vector<2x128xf32>
    %237 = vector.shape_cast %236 : vector<2x128xf32> to vector<2x1x128xf32>
    %c0_88 = arith.constant 0 : index
    %238 = arith.index_cast %c5_i32 : i32 to index
    %c0_89 = arith.constant 0 : index
    %239 = vector.load %arg6[%c0_88, %238, %c0_89] : memref<2x8x128xf32, #tpu.memory_space<vmem>>, vector<2x1x128xf32>
    tpu.vector_store %arg6[%c0_88, %238, %c0_89], %237 {strides = array<i32>} : memref<2x8x128xf32, #tpu.memory_space<vmem>>, vector<2x1x128xf32>,
    %c6_i32 = arith.constant 6 : i32
    %240 = arith.index_cast %c6_i32 : i32 to index
    %c0_90 = arith.constant 0 : index
    %c0_91 = arith.constant 0 : index
    %241 = vector.load %arg2[%240, %c0_90, %c0_91] : memref<8x2x512xf32, #tpu.memory_space<vmem>>, vector<1x2x512xf32>
    %242 = vector.shape_cast %241 : vector<1x2x512xf32> to vector<2x512xf32>
    %cst_92 = arith.constant dense<0.000000e+00> : vector<2x512xf32>
    %243 = tpu.matmul %236, %3, %cst_92 {dimension_numbers = #tpu.dot_dimension_numbers<[1], [0], [0], [1], [0, 0, 1, 1], [], []>} : vector<2x128xf32>, vector<128x512xf32>, vector<2x512xf32> -> vector<2x512xf32>
    %244 = arith.addf %242, %243 : vector<2x512xf32>
    %245 = vector.extract_strided_slice %244 {offsets = [0, 0], sizes = [2, 128], strides = [1, 1]} : vector<2x512xf32> to vector<2x128xf32>
    %cst_93 = arith.constant 5.000000e-01 : f32
    %246 = vector.broadcast %cst_93 : f32 to vector<2x128xf32>
    %247 = arith.mulf %246, %245 : vector<2x128xf32>
    %248 = math.tanh %247 : vector<2x128xf32>
    %cst_94 = arith.constant 5.000000e-01 : f32
    %249 = vector.broadcast %cst_94 : f32 to vector<2x128xf32>
    %250 = arith.mulf %249, %248 : vector<2x128xf32>
    %cst_95 = arith.constant 5.000000e-01 : f32
    %251 = vector.broadcast %cst_95 : f32 to vector<2x128xf32>
    %252 = arith.addf %250, %251 : vector<2x128xf32>
    %253 = vector.extract_strided_slice %244 {offsets = [0, 128], sizes = [2, 128], strides = [1, 1]} : vector<2x512xf32> to vector<2x128xf32>
    %cst_96 = arith.constant 5.000000e-01 : f32
    %254 = vector.broadcast %cst_96 : f32 to vector<2x128xf32>
    %255 = arith.mulf %254, %253 : vector<2x128xf32>
    %256 = math.tanh %255 : vector<2x128xf32>
    %cst_97 = arith.constant 5.000000e-01 : f32
    %257 = vector.broadcast %cst_97 : f32 to vector<2x128xf32>
    %258 = arith.mulf %257, %256 : vector<2x128xf32>
    %cst_98 = arith.constant 5.000000e-01 : f32
    %259 = vector.broadcast %cst_98 : f32 to vector<2x128xf32>
    %260 = arith.addf %258, %259 : vector<2x128xf32>
    %261 = vector.extract_strided_slice %244 {offsets = [0, 256], sizes = [2, 128], strides = [1, 1]} : vector<2x512xf32> to vector<2x128xf32>
    %262 = math.tanh %261 : vector<2x128xf32>
    %263 = vector.extract_strided_slice %244 {offsets = [0, 384], sizes = [2, 128], strides = [1, 1]} : vector<2x512xf32> to vector<2x128xf32>
    %cst_99 = arith.constant 5.000000e-01 : f32
    %264 = vector.broadcast %cst_99 : f32 to vector<2x128xf32>
    %265 = arith.mulf %264, %263 : vector<2x128xf32>
    %266 = math.tanh %265 : vector<2x128xf32>
    %cst_100 = arith.constant 5.000000e-01 : f32
    %267 = vector.broadcast %cst_100 : f32 to vector<2x128xf32>
    %268 = arith.mulf %267, %266 : vector<2x128xf32>
    %cst_101 = arith.constant 5.000000e-01 : f32
    %269 = vector.broadcast %cst_101 : f32 to vector<2x128xf32>
    %270 = arith.addf %268, %269 : vector<2x128xf32>
    %271 = arith.mulf %260, %234 : vector<2x128xf32>
    %272 = arith.mulf %252, %262 : vector<2x128xf32>
    %273 = arith.addf %271, %272 : vector<2x128xf32>
    %274 = math.tanh %273 : vector<2x128xf32>
    %275 = arith.mulf %270, %274 : vector<2x128xf32>
    %276 = vector.shape_cast %275 : vector<2x128xf32> to vector<2x1x128xf32>
    %c0_102 = arith.constant 0 : index
    %277 = arith.index_cast %c6_i32 : i32 to index
    %c0_103 = arith.constant 0 : index
    %278 = vector.load %arg6[%c0_102, %277, %c0_103] : memref<2x8x128xf32, #tpu.memory_space<vmem>>, vector<2x1x128xf32>
    tpu.vector_store %arg6[%c0_102, %277, %c0_103], %276 {strides = array<i32>} : memref<2x8x128xf32, #tpu.memory_space<vmem>>, vector<2x1x128xf32>,
    %c7_i32 = arith.constant 7 : i32
    %279 = arith.index_cast %c7_i32 : i32 to index
    %c0_104 = arith.constant 0 : index
    %c0_105 = arith.constant 0 : index
    %280 = vector.load %arg2[%279, %c0_104, %c0_105] : memref<8x2x512xf32, #tpu.memory_space<vmem>>, vector<1x2x512xf32>
    %281 = vector.shape_cast %280 : vector<1x2x512xf32> to vector<2x512xf32>
    %cst_106 = arith.constant dense<0.000000e+00> : vector<2x512xf32>
    %282 = tpu.matmul %275, %3, %cst_106 {dimension_numbers = #tpu.dot_dimension_numbers<[1], [0], [0], [1], [0, 0, 1, 1], [], []>} : vector<2x128xf32>, vector<128x512xf32>, vector<2x512xf32> -> vector<2x512xf32>
    %283 = arith.addf %281, %282 : vector<2x512xf32>
    %284 = vector.extract_strided_slice %283 {offsets = [0, 0], sizes = [2, 128], strides = [1, 1]} : vector<2x512xf32> to vector<2x128xf32>
    %cst_107 = arith.constant 5.000000e-01 : f32
    %285 = vector.broadcast %cst_107 : f32 to vector<2x128xf32>
    %286 = arith.mulf %285, %284 : vector<2x128xf32>
    %287 = math.tanh %286 : vector<2x128xf32>
    %cst_108 = arith.constant 5.000000e-01 : f32
    %288 = vector.broadcast %cst_108 : f32 to vector<2x128xf32>
    %289 = arith.mulf %288, %287 : vector<2x128xf32>
    %cst_109 = arith.constant 5.000000e-01 : f32
    %290 = vector.broadcast %cst_109 : f32 to vector<2x128xf32>
    %291 = arith.addf %289, %290 : vector<2x128xf32>
    %292 = vector.extract_strided_slice %283 {offsets = [0, 128], sizes = [2, 128], strides = [1, 1]} : vector<2x512xf32> to vector<2x128xf32>
    %cst_110 = arith.constant 5.000000e-01 : f32
    %293 = vector.broadcast %cst_110 : f32 to vector<2x128xf32>
    %294 = arith.mulf %293, %292 : vector<2x128xf32>
    %295 = math.tanh %294 : vector<2x128xf32>
    %cst_111 = arith.constant 5.000000e-01 : f32
    %296 = vector.broadcast %cst_111 : f32 to vector<2x128xf32>
    %297 = arith.mulf %296, %295 : vector<2x128xf32>
    %cst_112 = arith.constant 5.000000e-01 : f32
    %298 = vector.broadcast %cst_112 : f32 to vector<2x128xf32>
    %299 = arith.addf %297, %298 : vector<2x128xf32>
    %300 = vector.extract_strided_slice %283 {offsets = [0, 256], sizes = [2, 128], strides = [1, 1]} : vector<2x512xf32> to vector<2x128xf32>
    %301 = math.tanh %300 : vector<2x128xf32>
    %302 = vector.extract_strided_slice %283 {offsets = [0, 384], sizes = [2, 128], strides = [1, 1]} : vector<2x512xf32> to vector<2x128xf32>
    %cst_113 = arith.constant 5.000000e-01 : f32
    %303 = vector.broadcast %cst_113 : f32 to vector<2x128xf32>
    %304 = arith.mulf %303, %302 : vector<2x128xf32>
    %305 = math.tanh %304 : vector<2x128xf32>
    %cst_114 = arith.constant 5.000000e-01 : f32
    %306 = vector.broadcast %cst_114 : f32 to vector<2x128xf32>
    %307 = arith.mulf %306, %305 : vector<2x128xf32>
    %cst_115 = arith.constant 5.000000e-01 : f32
    %308 = vector.broadcast %cst_115 : f32 to vector<2x128xf32>
    %309 = arith.addf %307, %308 : vector<2x128xf32>
    %310 = arith.mulf %299, %273 : vector<2x128xf32>
    %311 = arith.mulf %291, %301 : vector<2x128xf32>
    %312 = arith.addf %310, %311 : vector<2x128xf32>
    %313 = math.tanh %312 : vector<2x128xf32>
    %314 = arith.mulf %309, %313 : vector<2x128xf32>
    %315 = vector.shape_cast %314 : vector<2x128xf32> to vector<2x1x128xf32>
    %c0_116 = arith.constant 0 : index
    %316 = arith.index_cast %c7_i32 : i32 to index
    %c0_117 = arith.constant 0 : index
    %317 = vector.load %arg6[%c0_116, %316, %c0_117] : memref<2x8x128xf32, #tpu.memory_space<vmem>>, vector<2x1x128xf32>
    tpu.vector_store %arg6[%c0_116, %316, %c0_117], %315 {strides = array<i32>} : memref<2x8x128xf32, #tpu.memory_space<vmem>>, vector<2x1x128xf32>,
    %c8_i32 = arith.constant 8 : i32
    %c0_118 = arith.constant 0 : index
    %c0_119 = arith.constant 0 : index
    %318 = vector.load %arg7[%c0_118, %c0_119] : memref<2x128xf32, #tpu.memory_space<vmem>>, vector<2x128xf32>
    tpu.vector_store %arg7[%c0_118, %c0_119], %314 {strides = array<i32>} : memref<2x128xf32, #tpu.memory_space<vmem>>, vector<2x128xf32>,
    %c0_120 = arith.constant 0 : index
    %c0_121 = arith.constant 0 : index
    %319 = vector.load %arg8[%c0_120, %c0_121] : memref<2x128xf32, #tpu.memory_space<vmem>>, vector<2x128xf32>
    tpu.vector_store %arg8[%c0_120, %c0_121], %312 {strides = array<i32>} : memref<2x128xf32, #tpu.memory_space<vmem>>, vector<2x128xf32>,
    return
  }
  func.func @transform_0(%arg0: i32, %arg1: i32) -> (i32, i32, i32) {
    %c0_i32 = arith.constant 0 : i32
    %c0_i32_0 = arith.constant 0 : i32
    return %arg1, %arg0, %c0_i32 : i32, i32, i32
  }
  func.func @transform_1(%arg0: i32, %arg1: i32) -> (i32, i32) {
    %c0_i32 = arith.constant 0 : i32
    %c0_i32_0 = arith.constant 0 : i32
    %c0_i32_1 = arith.constant 0 : i32
    return %c0_i32, %c0_i32_0 : i32, i32
  }
  func.func @transform_2(%arg0: i32, %arg1: i32) -> (i32, i32) {
    %c0_i32 = arith.constant 0 : i32
    %c0_i32_0 = arith.constant 0 : i32
    %c0_i32_1 = arith.constant 0 : i32
    return %c0_i32, %c0_i32_0 : i32, i32
  }
  func.func @transform_3(%arg0: i32, %arg1: i32) -> (i32, i32) {
    %c0_i32 = arith.constant 0 : i32
    %c0_i32_0 = arith.constant 0 : i32
    %c0_i32_1 = arith.constant 0 : i32
    return %c0_i32, %c0_i32_0 : i32, i32
  }
  func.func @transform_4(%arg0: i32, %arg1: i32) -> (i32, i32, i32) {
    %c0_i32 = arith.constant 0 : i32
    %c0_i32_0 = arith.constant 0 : i32
    return %arg0, %arg1, %c0_i32 : i32, i32, i32
  }
}

</mosaic_0001>

<llo_original>
// kernel: tpu_custom_call.1
$region0: #{tpu_custom_call.1}
  #allocation0 [shape = 'u32[]', space=smem, size = 0x4, offset = 0x4, fixed_abs, tag = 'smem constant byte address 0x4 - core index']
  #allocation1 [shape = 'u32[72,128]{1,0:T(1,128)}', space=vmem, size = 0x9000, scoped, tag = 'internal scratch']
  #allocation2 [shape = 'f32[2,128]{1,0:T(2,128)}', space=vmem, size = 0x400, scoped, tag = 'scratch operand']
  #allocation3 [shape = 'f32[2,128]{1,0:T(2,128)}', space=vmem, size = 0x400, scoped, tag = 'scratch operand']
  %s0 = inlined_call_operand.hbm [shape: f32[8,2,512], index: 0, kind: input, shape index: {}]
  %s1 = inlined_call_operand.hbm [shape: f32[128,512], index: 1, kind: input, shape index: {}]
  %s2 = inlined_call_operand.vmem [shape: f32[1,128], index: 2, kind: input, shape index: {}]
  %s3 = inlined_call_operand.vmem [shape: f32[1,128], index: 3, kind: input, shape index: {}]
  %s4 = inlined_call_operand.hbm [shape: f32[2,8,128], index: 4, kind: output, shape index: {}]
  %s5 = sld [smem:[#allocation0]]
  $region38: #{tpu_custom_call.1} parent=0
    _
  %s7 = ssub.s32 1, %s5
  %s8 = scalar_select 0, %s7, %s5
  $region1: #{tpu_custom_call.1} parent=0
    #allocation4 [shape = 'u8[32768]{0}', space=vmem, size = 0x8000, scoped, tag = 'input window, operand 0, single buffered']
    #allocation5 [shape = 's32[1]{0}', space=sflag, size = 0x4, scoped, tag = 'scoped memory for tpu_custom_call.1']
    #allocation6 [shape = 's32[1]{0}', space=sflag, size = 0x4, scoped, tag = 'scoped memory for tpu_custom_call.1']
    #allocation7 [shape = 'u8[262144]{0}', space=vmem, size = 0x40000, scoped, tag = 'input window, operand 1, single buffered']
    #allocation8 [shape = 's32[1]{0}', space=sflag, size = 0x4, scoped, tag = 'scoped memory for tpu_custom_call.1']
    #allocation9 [shape = 'u8[8192]{0}', space=vmem, size = 0x2000, scoped, tag = 'output window, operand 0, single buffered']
    %9 = vsyncpa [#allocation5], 0
    %10 = vsyncpa [#allocation8], 0
    %11 = vsyncpa [#allocation6], 0
    // Predicated region
    $region2: #{tpu_custom_call.1} parent=1 // pred_check
      _
    $region3: #{tpu_custom_call.1} parent=1 // pred_check_branch
      %13 = sbr.rel (0) target = $region5
    $region4: #{tpu_custom_call.1} parent=1 // pred_region
      %15 = vsyncadd [#allocation5], 0
      %s16 = sshll.u32 %s0, 4
      %s17 = int_to_ptr.hbm [resolvable:$true] %s16
      %s18 = sshll.u32 [#allocation4], 4
      %s19 = int_to_ptr.vmem [resolvable:$true] %s18
      %24 = dma.hbm_to_vmem [thread:$0]  %s17, 1024, %s19, [#allocation5], 128, 128, 8
    $region5: #{tpu_custom_call.1} parent=1 // pred_fallthru
      _
    // Predicated region
    $region6: #{tpu_custom_call.1} parent=1 // pred_check
      _
    $region7: #{tpu_custom_call.1} parent=1 // pred_check_branch
      %26 = sbr.rel (0) target = $region9
    $region8: #{tpu_custom_call.1} parent=1 // pred_region
      %28 = vsyncadd [#allocation8], 0
      %s29 = sshll.u32 %s1, 4
      %s30 = int_to_ptr.hbm [resolvable:$true] %s29
      %s31 = sshll.u32 [#allocation7], 4
      %s32 = int_to_ptr.vmem [resolvable:$true] %s31
      %37 = dma.hbm_to_vmem [thread:$0]  %s30, 8192, %s32, [#allocation8], 512, 512, 32
    $region9: #{tpu_custom_call.1} parent=1 // pred_fallthru
      _
    // Predicated region
    $region10: #{tpu_custom_call.1} parent=1 // pred_check
      _
    $region11: #{tpu_custom_call.1} parent=1 // pred_check_branch
      %39 = sbr.rel (0) target = $region13
    $region12: #{tpu_custom_call.1} parent=1 // pred_region
      _
    $region13: #{tpu_custom_call.1} parent=1 // pred_fallthru
      _
    // Predicated region
    $region14: #{tpu_custom_call.1} parent=1 // pred_check
      _
    $region15: #{tpu_custom_call.1} parent=1 // pred_check_branch
      %41 = sbr.rel (0) target = $region17
    $region16: #{tpu_custom_call.1} parent=1 // pred_region
      _
    $region17: #{tpu_custom_call.1} parent=1 // pred_fallthru
      _
    // Predicated region
    $region18: #{tpu_custom_call.1} parent=1 // pred_check
      _
    $region19: #{tpu_custom_call.1} parent=1 // pred_check_branch
      %43 = sbr.rel (0) target = $region21
    $region20: #{tpu_custom_call.1} parent=1 // pred_region
      %45 = dma.done [#allocation5], 1024
    $region21: #{tpu_custom_call.1} parent=1 // pred_fallthru
      _
    // Predicated region
    $region22: #{tpu_custom_call.1} parent=1 // pred_check
      _
    $region23: #{tpu_custom_call.1} parent=1 // pred_check_branch
      %47 = sbr.rel (0) target = $region25
    $region24: #{tpu_custom_call.1} parent=1 // pred_region
      %49 = dma.done [#allocation8], 8192
    $region25: #{tpu_custom_call.1} parent=1 // pred_fallthru
      _
    %p50 = scmp.eq.s32.totalorder 0, 0
    // Predicated region
    $region26: #{tpu_custom_call.1} parent=1 // pred_check
      %p51 = pneg %p50
    $region27: #{tpu_custom_call.1} parent=1 // pred_check_branch
      %53 = sbr.rel (%p51) target = $region29
    $region28: #{tpu_custom_call.1} parent=1 // pred_region
      %v54 = vld [vmem:[%s2] sm:$0x1]
      %v56 = vperm.slane %v54, 0
      %58 = vst [vmem:[#allocation2] sm:$0x3] %v56
      %v59 = vld [vmem:[%s3] sm:$0x1]
      %v61 = vperm.slane %v59, 0
      %63 = vst [vmem:[#allocation3] sm:$0x3] %v61
    $region29: #{tpu_custom_call.1} parent=1 // pred_fallthru
      _
    %v64 = vld [vmem:[#allocation7] sm:$0xff]
    %v65 = vld [vmem:[#allocation7 + $0x8] sm:$0xff]
    %v66 = vld [vmem:[#allocation7 + $0x10] sm:$0xff]
    %v67 = vld [vmem:[#allocation7 + $0x18] sm:$0xff]
    %v68 = vld [vmem:[#allocation7 + $0x20] sm:$0xff]
    %v69 = vld [vmem:[#allocation7 + $0x28] sm:$0xff]
    %v70 = vld [vmem:[#allocation7 + $0x30] sm:$0xff]
    %v71 = vld [vmem:[#allocation7 + $0x38] sm:$0xff]
    %v72 = vld [vmem:[#allocation7 + $0x40] sm:$0xff]
    %v73 = vld [vmem:[#allocation7 + $0x48] sm:$0xff]
    %v74 = vld [vmem:[#allocation7 + $0x50] sm:$0xff]
    %v75 = vld [vmem:[#allocation7 + $0x58] sm:$0xff]
    %v76 = vld [vmem:[#allocation7 + $0x60] sm:$0xff]
    %v77 = vld [vmem:[#allocation7 + $0x68] sm:$0xff]
    %v78 = vld [vmem:[#allocation7 + $0x70] sm:$0xff]
    %v79 = vld [vmem:[#allocation7 + $0x78] sm:$0xff]
    %v80 = vld [vmem:[#allocation7 + $0x80] sm:$0xff]
    %v81 = vld [vmem:[#allocation7 + $0x88] sm:$0xff]
    %v82 = vld [vmem:[#allocation7 + $0x90] sm:$0xff]
    %v83 = vld [vmem:[#allocation7 + $0x98] sm:$0xff]
    %v84 = vld [vmem:[#allocation7 + $0xa0] sm:$0xff]
    %v85 = vld [vmem:[#allocation7 + $0xa8] sm:$0xff]
    %v86 = vld [vmem:[#allocation7 + $0xb0] sm:$0xff]
    %v87 = vld [vmem:[#allocation7 + $0xb8] sm:$0xff]
    %v88 = vld [vmem:[#allocation7 + $0xc0] sm:$0xff]
    %v89 = vld [vmem:[#allocation7 + $0xc8] sm:$0xff]
    %v90 = vld [vmem:[#allocation7 + $0xd0] sm:$0xff]
    %v91 = vld [vmem:[#allocation7 + $0xd8] sm:$0xff]
    %v92 = vld [vmem:[#allocation7 + $0xe0] sm:$0xff]
    %v93 = vld [vmem:[#allocation7 + $0xe8] sm:$0xff]
    %v94 = vld [vmem:[#allocation7 + $0xf0] sm:$0xff]
    %v95 = vld [vmem:[#allocation7 + $0xf8] sm:$0xff]
    %v96 = vld [vmem:[#allocation7 + $0x100] sm:$0xff]
    %v97 = vld [vmem:[#allocation7 + $0x108] sm:$0xff]
    %v98 = vld [vmem:[#allocation7 + $0x110] sm:$0xff]
    %v99 = vld [vmem:[#allocation7 + $0x118] sm:$0xff]
    %v100 = vld [vmem:[#allocation7 + $0x120] sm:$0xff]
    %v101 = vld [vmem:[#allocation7 + $0x128] sm:$0xff]
    %v102 = vld [vmem:[#allocation7 + $0x130] sm:$0xff]
    %v103 = vld [vmem:[#allocation7 + $0x138] sm:$0xff]
    %v104 = vld [vmem:[#allocation7 + $0x140] sm:$0xff]
    %v105 = vld [vmem:[#allocation7 + $0x148] sm:$0xff]
    %v106 = vld [vmem:[#allocation7 + $0x150] sm:$0xff]
    %v107 = vld [vmem:[#allocation7 + $0x158] sm:$0xff]
    %v108 = vld [vmem:[#allocation7 + $0x160] sm:$0xff]
    %v109 = vld [vmem:[#allocation7 + $0x168] sm:$0xff]
    %v110 = vld [vmem:[#allocation7 + $0x170] sm:$0xff]
    %v111 = vld [vmem:[#allocation7 + $0x178] sm:$0xff]
    %v112 = vld [vmem:[#allocation7 + $0x180] sm:$0xff]
    %v113 = vld [vmem:[#allocation7 + $0x188] sm:$0xff]
    %v114 = vld [vmem:[#allocation7 + $0x190] sm:$0xff]
    %v115 = vld [vmem:[#allocation7 + $0x198] sm:$0xff]
    %v116 = vld [vmem:[#allocation7 + $0x1a0] sm:$0xff]
    %v117 = vld [vmem:[#allocation7 + $0x1a8] sm:$0xff]
    %v118 = vld [vmem:[#allocation7 + $0x1b0] sm:$0xff]
    %v119 = vld [vmem:[#allocation7 + $0x1b8] sm:$0xff]
    %v120 = vld [vmem:[#allocation7 + $0x1c0] sm:$0xff]
    %v121 = vld [vmem:[#allocation7 + $0x1c8] sm:$0xff]
    %v122 = vld [vmem:[#allocation7 + $0x1d0] sm:$0xff]
    %v123 = vld [vmem:[#allocation7 + $0x1d8] sm:$0xff]
    %v124 = vld [vmem:[#allocation7 + $0x1e0] sm:$0xff]
    %v125 = vld [vmem:[#allocation7 + $0x1e8] sm:$0xff]
    %v126 = vld [vmem:[#allocation7 + $0x1f0] sm:$0xff]
    %v127 = vld [vmem:[#allocation7 + $0x1f8] sm:$0xff]
    %v128 = vld [vmem:[#allocation2] sm:$0x3]
    %v129 = vld [vmem:[#allocation3] sm:$0x3]
    %v130 = vld [vmem:[#allocation4] sm:$0xff]
    %131 = vmatpush.msra.mxu0 %v124
    %132 = vmatpush.msra.mxu0 %v120
    %133 = vmatpush.msra.mxu0 %v116
    %134 = vmatpush.msra.mxu0 %v112
    %135 = vmatpush.msra.mxu0 %v108
    %136 = vmatpush.msra.mxu0 %v104
    %137 = vmatpush.msra.mxu0 %v100
    %138 = vmatpush.msra.mxu0 %v96
    %139 = vmatpush.msra.mxu0 %v92
    %140 = vmatpush.msra.mxu0 %v88
    %141 = vmatpush.msra.mxu0 %v84
    %142 = vmatpush.msra.mxu0 %v80
    %143 = vmatpush.msra.mxu0 %v76
    %144 = vmatpush.msra.mxu0 %v72
    %145 = vmatpush.msra.mxu0 %v68
    %146 = vmatpush.msra.mxu0 %v64
    %147 = vmatmul.f32.gmra.mxu0 %v128
    %v148 = vpop.f32.mrf.mxu0
    %v149 = vadd.f32 0.0, %v148
    %150 = vdwg.mxu0
    %151 = vmatpush.msra.mxu0 %v125
    %152 = vmatpush.msra.mxu0 %v121
    %153 = vmatpush.msra.mxu0 %v117
    %154 = vmatpush.msra.mxu0 %v113
    %155 = vmatpush.msra.mxu0 %v109
    %156 = vmatpush.msra.mxu0 %v105
    %157 = vmatpush.msra.mxu0 %v101
    %158 = vmatpush.msra.mxu0 %v97
    %159 = vmatpush.msra.mxu0 %v93
    %160 = vmatpush.msra.mxu0 %v89
    %161 = vmatpush.msra.mxu0 %v85
    %162 = vmatpush.msra.mxu0 %v81
    %163 = vmatpush.msra.mxu0 %v77
    %164 = vmatpush.msra.mxu0 %v73
    %165 = vmatpush.msra.mxu0 %v69
    %166 = vmatpush.msra.mxu0 %v65
    %167 = vmatmul.f32.gmra.mxu0 %v128
    %v168 = vpop.f32.mrf.mxu0
    %v169 = vadd.f32 0.0, %v168
    %170 = vdwg.mxu0
    %171 = vmatpush.msra.mxu0 %v126
    %172 = vmatpush.msra.mxu0 %v122
    %173 = vmatpush.msra.mxu0 %v118
    %174 = vmatpush.msra.mxu0 %v114
    %175 = vmatpush.msra.mxu0 %v110
    %176 = vmatpush.msra.mxu0 %v106
    %177 = vmatpush.msra.mxu0 %v102
    %178 = vmatpush.msra.mxu0 %v98
    %179 = vmatpush.msra.mxu0 %v94
    %180 = vmatpush.msra.mxu0 %v90
    %181 = vmatpush.msra.mxu0 %v86
    %182 = vmatpush.msra.mxu0 %v82
    %183 = vmatpush.msra.mxu0 %v78
    %184 = vmatpush.msra.mxu0 %v74
    %185 = vmatpush.msra.mxu0 %v70
    %186 = vmatpush.msra.mxu0 %v66
    %187 = vmatmul.f32.gmra.mxu0 %v128
    %v188 = vpop.f32.mrf.mxu0
    %v189 = vadd.f32 0.0, %v188
    %190 = vdwg.mxu0
    %191 = vmatpush.msra.mxu0 %v127
    %192 = vmatpush.msra.mxu0 %v123
    %193 = vmatpush.msra.mxu0 %v119
    %194 = vmatpush.msra.mxu0 %v115
    %195 = vmatpush.msra.mxu0 %v111
    %196 = vmatpush.msra.mxu0 %v107
    %197 = vmatpush.msra.mxu0 %v103
    %198 = vmatpush.msra.mxu0 %v99
    %199 = vmatpush.msra.mxu0 %v95
    %200 = vmatpush.msra.mxu0 %v91
    %201 = vmatpush.msra.mxu0 %v87
    %202 = vmatpush.msra.mxu0 %v83
    %203 = vmatpush.msra.mxu0 %v79
    %204 = vmatpush.msra.mxu0 %v75
    %205 = vmatpush.msra.mxu0 %v71
    %206 = vmatpush.msra.mxu0 %v67
    %207 = vmatmul.f32.gmra.mxu0 %v128
    %v208 = vpop.f32.mrf.mxu0
    %v209 = vadd.f32 0.0, %v208
    %210 = vdwg.mxu0
    %v215 = vrot.slane %v169, 6
    %v216 = vrot.slane %v189, 4
    %v217 = vrot.slane %v209, 2
    %vm218 = vcmask 1041408
    %v219 = vsel %vm218, %v149, %v215
    %vm220 = vcmask 1045508
    %v221 = vsel %vm220, %v216, %v217
    %vm222 = vcmask 1043456
    %v223 = vsel %vm222, %v219, %v221
    %v225 = vadd.f32 %v130, %v223
    %v226 = vmul.f32 %v225, 0.5
    %v227 = vtanh.pop %v226
    %v228 = vmul.f32 %v227, 0.5
    %v229 = vadd.f32 %v228, 0.5
    %v231 = vrot.slane %v225, 2
    %v233 = vmul.f32 %v231, 0.5
    %v234 = vtanh.pop %v233
    %v235 = vmul.f32 %v234, 0.5
    %v236 = vadd.f32 %v235, 0.5
    %v237 = vrot.slane %v225, 4
    %v239 = vtanh.pop %v237
    %v240 = vrot.slane %v225, 6
    %v242 = vmul.f32 %v240, 0.5
    %v243 = vtanh.pop %v242
    %v244 = vmul.f32 %v243, 0.5
    %v245 = vadd.f32 %v244, 0.5
    %v246 = vmul.f32 %v236, %v129
    %v247 = vmul.f32 %v229, %v239
    %v248 = vadd.f32 %v246, %v247
    %v249 = vtanh.pop %v248
    %v250 = vmul.f32 %v245, %v249
    %v252 = vrot.slane %v250, 1
    %v253 = vrot.slane %v250, 2
    %v254 = vrot.slane %v250, 3
    %vm255 = vcmask 1040384
    %v256 = vsel %vm255, %v250, %v252
    %vm257 = vcmask 1042434
    %v258 = vsel %vm257, %v253, %v254
    %v259 = vsel %vm218, %v256, %v258
    %vm260 = vcmask 1041409
    %v261 = vsel %vm260, %v250, %v252
    %vm262 = vcmask 1043459
    %v263 = vsel %vm262, %v253, %v254
    %vm264 = vcmask 1042433
    %v265 = vsel %vm264, %v261, %v263
    %v266 = vrot.slane %v265, 1
    %269 = vst [vmem:[#allocation9] sm:$0x1] %v259
    %270 = vst [vmem:[#allocation9 + $0x8] sm:$0x1] %v266
    %s271 = scalar_lea.vmem [#allocation4], 8
    %v272 = vld [vmem:[%s271] sm:$0xff]
    %273 = vmatpush.msra.mxu0 %v124
    %274 = vmatpush.msra.mxu0 %v120
    %275 = vmatpush.msra.mxu0 %v116
    %276 = vmatpush.msra.mxu0 %v112
    %277 = vmatpush.msra.mxu0 %v108
    %278 = vmatpush.msra.mxu0 %v104
    %279 = vmatpush.msra.mxu0 %v100
    %280 = vmatpush.msra.mxu0 %v96
    %281 = vmatpush.msra.mxu0 %v92
    %282 = vmatpush.msra.mxu0 %v88
    %283 = vmatpush.msra.mxu0 %v84
    %284 = vmatpush.msra.mxu0 %v80
    %285 = vmatpush.msra.mxu0 %v76
    %286 = vmatpush.msra.mxu0 %v72
    %287 = vmatpush.msra.mxu0 %v68
    %288 = vmatpush.msra.mxu0 %v64
    %289 = vmatmul.f32.gmra.mxu0 %v250
    %v290 = vpop.f32.mrf.mxu0
    %v291 = vadd.f32 0.0, %v290
    %292 = vdwg.mxu0
    %293 = vmatpush.msra.mxu0 %v125
    %294 = vmatpush.msra.mxu0 %v121
    %295 = vmatpush.msra.mxu0 %v117
    %296 = vmatpush.msra.mxu0 %v113
    %297 = vmatpush.msra.mxu0 %v109
    %298 = vmatpush.msra.mxu0 %v105
    %299 = vmatpush.msra.mxu0 %v101
    %300 = vmatpush.msra.mxu0 %v97
    %301 = vmatpush.msra.mxu0 %v93
    %302 = vmatpush.msra.mxu0 %v89
    %303 = vmatpush.msra.mxu0 %v85
    %304 = vmatpush.msra.mxu0 %v81
    %305 = vmatpush.msra.mxu0 %v77
    %306 = vmatpush.msra.mxu0 %v73
    %307 = vmatpush.msra.mxu0 %v69
    %308 = vmatpush.msra.mxu0 %v65
    %309 = vmatmul.f32.gmra.mxu0 %v250
    %v310 = vpop.f32.mrf.mxu0
    %v311 = vadd.f32 0.0, %v310
    %312 = vdwg.mxu0
    %313 = vmatpush.msra.mxu0 %v126
    %314 = vmatpush.msra.mxu0 %v122
    %315 = vmatpush.msra.mxu0 %v118
    %316 = vmatpush.msra.mxu0 %v114
    %317 = vmatpush.msra.mxu0 %v110
    %318 = vmatpush.msra.mxu0 %v106
    %319 = vmatpush.msra.mxu0 %v102
    %320 = vmatpush.msra.mxu0 %v98
    %321 = vmatpush.msra.mxu0 %v94
    %322 = vmatpush.msra.mxu0 %v90
    %323 = vmatpush.msra.mxu0 %v86
    %324 = vmatpush.msra.mxu0 %v82
    %325 = vmatpush.msra.mxu0 %v78
    %326 = vmatpush.msra.mxu0 %v74
    %327 = vmatpush.msra.mxu0 %v70
    %328 = vmatpush.msra.mxu0 %v66
    %329 = vmatmul.f32.gmra.mxu0 %v250
    %v330 = vpop.f32.mrf.mxu0
    %v331 = vadd.f32 0.0, %v330
    %332 = vdwg.mxu0
    %333 = vmatpush.msra.mxu0 %v127
    %334 = vmatpush.msra.mxu0 %v123
    %335 = vmatpush.msra.mxu0 %v119
    %336 = vmatpush.msra.mxu0 %v115
    %337 = vmatpush.msra.mxu0 %v111
    %338 = vmatpush.msra.mxu0 %v107
    %339 = vmatpush.msra.mxu0 %v103
    %340 = vmatpush.msra.mxu0 %v99
    %341 = vmatpush.msra.mxu0 %v95
    %342 = vmatpush.msra.mxu0 %v91
    %343 = vmatpush.msra.mxu0 %v87
    %344 = vmatpush.msra.mxu0 %v83
    %345 = vmatpush.msra.mxu0 %v79
    %346 = vmatpush.msra.mxu0 %v75
    %347 = vmatpush.msra.mxu0 %v71
    %348 = vmatpush.msra.mxu0 %v67
    %349 = vmatmul.f32.gmra.mxu0 %v250
    %v350 = vpop.f32.mrf.mxu0
    %v351 = vadd.f32 0.0, %v350
    %352 = vdwg.mxu0
    %v357 = vrot.slane %v311, 6
    %v358 = vrot.slane %v331, 4
    %v359 = vrot.slane %v351, 2
    %v360 = vsel %vm218, %v291, %v357
    %v361 = vsel %vm220, %v358, %v359
    %v362 = vsel %vm222, %v360, %v361
    %v364 = vadd.f32 %v272, %v362
    %v365 = vmul.f32 %v364, 0.5
    %v366 = vtanh.pop %v365
    %v367 = vmul.f32 %v366, 0.5
    %v368 = vadd.f32 %v367, 0.5
    %v370 = vrot.slane %v364, 2
    %v372 = vmul.f32 %v370, 0.5
    %v373 = vtanh.pop %v372
    %v374 = vmul.f32 %v373, 0.5
    %v375 = vadd.f32 %v374, 0.5
    %v376 = vrot.slane %v364, 4
    %v378 = vtanh.pop %v376
    %v379 = vrot.slane %v364, 6
    %v381 = vmul.f32 %v379, 0.5
    %v382 = vtanh.pop %v381
    %v383 = vmul.f32 %v382, 0.5
    %v384 = vadd.f32 %v383, 0.5
    %v385 = vmul.f32 %v375, %v248
    %v386 = vmul.f32 %v368, %v378
    %v387 = vadd.f32 %v385, %v386
    %v388 = vtanh.pop %v387
    %v389 = vmul.f32 %v384, %v388
    %v391 = vrot.slane %v389, 1
    %v392 = vrot.slane %v389, 2
    %v393 = vrot.slane %v389, 3
    %v394 = vsel %vm255, %v389, %v391
    %v395 = vsel %vm257, %v392, %v393
    %v396 = vsel %vm218, %v394, %v395
    %v397 = vsel %vm260, %v389, %v391
    %v398 = vsel %vm262, %v392, %v393
    %v399 = vsel %vm264, %v397, %v398
    %v400 = vrot.slane %v399, 1
    %403 = vst [vmem:[#allocation9 + $0x1] sm:$0x1] %v396
    %404 = vst [vmem:[#allocation9 + $0x9] sm:$0x1] %v400
    %s405 = scalar_lea.vmem [#allocation4], 16
    %v406 = vld [vmem:[%s405] sm:$0xff]
    %407 = vmatpush.msra.mxu0 %v124
    %408 = vmatpush.msra.mxu0 %v120
    %409 = vmatpush.msra.mxu0 %v116
    %410 = vmatpush.msra.mxu0 %v112
    %411 = vmatpush.msra.mxu0 %v108
    %412 = vmatpush.msra.mxu0 %v104
    %413 = vmatpush.msra.mxu0 %v100
    %414 = vmatpush.msra.mxu0 %v96
    %415 = vmatpush.msra.mxu0 %v92
    %416 = vmatpush.msra.mxu0 %v88
    %417 = vmatpush.msra.mxu0 %v84
    %418 = vmatpush.msra.mxu0 %v80
    %419 = vmatpush.msra.mxu0 %v76
    %420 = vmatpush.msra.mxu0 %v72
    %421 = vmatpush.msra.mxu0 %v68
    %422 = vmatpush.msra.mxu0 %v64
    %423 = vmatmul.f32.gmra.mxu0 %v389
    %v424 = vpop.f32.mrf.mxu0
    %v425 = vadd.f32 0.0, %v424
    %426 = vdwg.mxu0
    %427 = vmatpush.msra.mxu0 %v125
    %428 = vmatpush.msra.mxu0 %v121
    %429 = vmatpush.msra.mxu0 %v117
    %430 = vmatpush.msra.mxu0 %v113
    %431 = vmatpush.msra.mxu0 %v109
    %432 = vmatpush.msra.mxu0 %v105
    %433 = vmatpush.msra.mxu0 %v101
    %434 = vmatpush.msra.mxu0 %v97
    %435 = vmatpush.msra.mxu0 %v93
    %436 = vmatpush.msra.mxu0 %v89
    %437 = vmatpush.msra.mxu0 %v85
    %438 = vmatpush.msra.mxu0 %v81
    %439 = vmatpush.msra.mxu0 %v77
    %440 = vmatpush.msra.mxu0 %v73
    %441 = vmatpush.msra.mxu0 %v69
    %442 = vmatpush.msra.mxu0 %v65
    %443 = vmatmul.f32.gmra.mxu0 %v389
    %v444 = vpop.f32.mrf.mxu0
    %v445 = vadd.f32 0.0, %v444
    %446 = vdwg.mxu0
    %447 = vmatpush.msra.mxu0 %v126
    %448 = vmatpush.msra.mxu0 %v122
    %449 = vmatpush.msra.mxu0 %v118
    %450 = vmatpush.msra.mxu0 %v114
    %451 = vmatpush.msra.mxu0 %v110
    %452 = vmatpush.msra.mxu0 %v106
    %453 = vmatpush.msra.mxu0 %v102
    %454 = vmatpush.msra.mxu0 %v98
    %455 = vmatpush.msra.mxu0 %v94
    %456 = vmatpush.msra.mxu0 %v90
    %457 = vmatpush.msra.mxu0 %v86
    %458 = vmatpush.msra.mxu0 %v82
    %459 = vmatpush.msra.mxu0 %v78
    %460 = vmatpush.msra.mxu0 %v74
    %461 = vmatpush.msra.mxu0 %v70
    %462 = vmatpush.msra.mxu0 %v66
    %463 = vmatmul.f32.gmra.mxu0 %v389
    %v464 = vpop.f32.mrf.mxu0
    %v465 = vadd.f32 0.0, %v464
    %466 = vdwg.mxu0
    %467 = vmatpush.msra.mxu0 %v127
    %468 = vmatpush.msra.mxu0 %v123
    %469 = vmatpush.msra.mxu0 %v119
    %470 = vmatpush.msra.mxu0 %v115
    %471 = vmatpush.msra.mxu0 %v111
    %472 = vmatpush.msra.mxu0 %v107
    %473 = vmatpush.msra.mxu0 %v103
    %474 = vmatpush.msra.mxu0 %v99
    %475 = vmatpush.msra.mxu0 %v95
    %476 = vmatpush.msra.mxu0 %v91
    %477 = vmatpush.msra.mxu0 %v87
    %478 = vmatpush.msra.mxu0 %v83
    %479 = vmatpush.msra.mxu0 %v79
    %480 = vmatpush.msra.mxu0 %v75
    %481 = vmatpush.msra.mxu0 %v71
    %482 = vmatpush.msra.mxu0 %v67
    %483 = vmatmul.f32.gmra.mxu0 %v389
    %v484 = vpop.f32.mrf.mxu0
    %v485 = vadd.f32 0.0, %v484
    %486 = vdwg.mxu0
    %v491 = vrot.slane %v445, 6
    %v492 = vrot.slane %v465, 4
    %v493 = vrot.slane %v485, 2
    %v494 = vsel %vm218, %v425, %v491
    %v495 = vsel %vm220, %v492, %v493
    %v496 = vsel %vm222, %v494, %v495
    %v498 = vadd.f32 %v406, %v496
    %v499 = vmul.f32 %v498, 0.5
    %v500 = vtanh.pop %v499
    %v501 = vmul.f32 %v500, 0.5
    %v502 = vadd.f32 %v501, 0.5
    %v504 = vrot.slane %v498, 2
    %v506 = vmul.f32 %v504, 0.5
    %v507 = vtanh.pop %v506
    %v508 = vmul.f32 %v507, 0.5
    %v509 = vadd.f32 %v508, 0.5
    %v510 = vrot.slane %v498, 4
    %v512 = vtanh.pop %v510
    %v513 = vrot.slane %v498, 6
    %v515 = vmul.f32 %v513, 0.5
    %v516 = vtanh.pop %v515
    %v517 = vmul.f32 %v516, 0.5
    %v518 = vadd.f32 %v517, 0.5
    %v519 = vmul.f32 %v509, %v387
    %v520 = vmul.f32 %v502, %v512
    %v521 = vadd.f32 %v519, %v520
    %v522 = vtanh.pop %v521
    %v523 = vmul.f32 %v518, %v522
    %v525 = vrot.slane %v523, 1
    %v526 = vrot.slane %v523, 2
    %v527 = vrot.slane %v523, 3
    %v528 = vsel %vm255, %v523, %v525
    %v529 = vsel %vm257, %v526, %v527
    %v530 = vsel %vm218, %v528, %v529
    %v531 = vsel %vm260, %v523, %v525
    %v532 = vsel %vm262, %v526, %v527
    %v533 = vsel %vm264, %v531, %v532
    %v534 = vrot.slane %v533, 1
    %537 = vst [vmem:[#allocation9 + $0x2] sm:$0x1] %v530
    %538 = vst [vmem:[#allocation9 + $0xa] sm:$0x1] %v534
    %s539 = scalar_lea.vmem [#allocation4], 24
    %v540 = vld [vmem:[%s539] sm:$0xff]
    %541 = vmatpush.msra.mxu0 %v124
    %542 = vmatpush.msra.mxu0 %v120
    %543 = vmatpush.msra.mxu0 %v116
    %544 = vmatpush.msra.mxu0 %v112
    %545 = vmatpush.msra.mxu0 %v108
    %546 = vmatpush.msra.mxu0 %v104
    %547 = vmatpush.msra.mxu0 %v100
    %548 = vmatpush.msra.mxu0 %v96
    %549 = vmatpush.msra.mxu0 %v92
    %550 = vmatpush.msra.mxu0 %v88
    %551 = vmatpush.msra.mxu0 %v84
    %552 = vmatpush.msra.mxu0 %v80
    %553 = vmatpush.msra.mxu0 %v76
    %554 = vmatpush.msra.mxu0 %v72
    %555 = vmatpush.msra.mxu0 %v68
    %556 = vmatpush.msra.mxu0 %v64
    %557 = vmatmul.f32.gmra.mxu0 %v523
    %v558 = vpop.f32.mrf.mxu0
    %v559 = vadd.f32 0.0, %v558
    %560 = vdwg.mxu0
    %561 = vmatpush.msra.mxu0 %v125
    %562 = vmatpush.msra.mxu0 %v121
    %563 = vmatpush.msra.mxu0 %v117
    %564 = vmatpush.msra.mxu0 %v113
    %565 = vmatpush.msra.mxu0 %v109
    %566 = vmatpush.msra.mxu0 %v105
    %567 = vmatpush.msra.mxu0 %v101
    %568 = vmatpush.msra.mxu0 %v97
    %569 = vmatpush.msra.mxu0 %v93
    %570 = vmatpush.msra.mxu0 %v89
    %571 = vmatpush.msra.mxu0 %v85
    %572 = vmatpush.msra.mxu0 %v81
    %573 = vmatpush.msra.mxu0 %v77
    %574 = vmatpush.msra.mxu0 %v73
    %575 = vmatpush.msra.mxu0 %v69
    %576 = vmatpush.msra.mxu0 %v65
    %577 = vmatmul.f32.gmra.mxu0 %v523
    %v578 = vpop.f32.mrf.mxu0
    %v579 = vadd.f32 0.0, %v578
    %580 = vdwg.mxu0
    %581 = vmatpush.msra.mxu0 %v126
    %582 = vmatpush.msra.mxu0 %v122
    %583 = vmatpush.msra.mxu0 %v118
    %584 = vmatpush.msra.mxu0 %v114
    %585 = vmatpush.msra.mxu0 %v110
    %586 = vmatpush.msra.mxu0 %v106
    %587 = vmatpush.msra.mxu0 %v102
    %588 = vmatpush.msra.mxu0 %v98
    %589 = vmatpush.msra.mxu0 %v94
    %590 = vmatpush.msra.mxu0 %v90
    %591 = vmatpush.msra.mxu0 %v86
    %592 = vmatpush.msra.mxu0 %v82
    %593 = vmatpush.msra.mxu0 %v78
    %594 = vmatpush.msra.mxu0 %v74
    %595 = vmatpush.msra.mxu0 %v70
    %596 = vmatpush.msra.mxu0 %v66
    %597 = vmatmul.f32.gmra.mxu0 %v523
    %v598 = vpop.f32.mrf.mxu0
    %v599 = vadd.f32 0.0, %v598
    %600 = vdwg.mxu0
    %601 = vmatpush.msra.mxu0 %v127
    %602 = vmatpush.msra.mxu0 %v123
    %603 = vmatpush.msra.mxu0 %v119
    %604 = vmatpush.msra.mxu0 %v115
    %605 = vmatpush.msra.mxu0 %v111
    %606 = vmatpush.msra.mxu0 %v107
    %607 = vmatpush.msra.mxu0 %v103
    %608 = vmatpush.msra.mxu0 %v99
    %609 = vmatpush.msra.mxu0 %v95
    %610 = vmatpush.msra.mxu0 %v91
    %611 = vmatpush.msra.mxu0 %v87
    %612 = vmatpush.msra.mxu0 %v83
    %613 = vmatpush.msra.mxu0 %v79
    %614 = vmatpush.msra.mxu0 %v75
    %615 = vmatpush.msra.mxu0 %v71
    %616 = vmatpush.msra.mxu0 %v67
    %617 = vmatmul.f32.gmra.mxu0 %v523
    %v618 = vpop.f32.mrf.mxu0
    %v619 = vadd.f32 0.0, %v618
    %620 = vdwg.mxu0
    %v625 = vrot.slane %v579, 6
    %v626 = vrot.slane %v599, 4
    %v627 = vrot.slane %v619, 2
    %v628 = vsel %vm218, %v559, %v625
    %v629 = vsel %vm220, %v626, %v627
    %v630 = vsel %vm222, %v628, %v629
    %v632 = vadd.f32 %v540, %v630
    %v633 = vmul.f32 %v632, 0.5
    %v634 = vtanh.pop %v633
    %v635 = vmul.f32 %v634, 0.5
    %v636 = vadd.f32 %v635, 0.5
    %v638 = vrot.slane %v632, 2
    %v640 = vmul.f32 %v638, 0.5
    %v641 = vtanh.pop %v640
    %v642 = vmul.f32 %v641, 0.5
    %v643 = vadd.f32 %v642, 0.5
    %v644 = vrot.slane %v632, 4
    %v646 = vtanh.pop %v644
    %v647 = vrot.slane %v632, 6
    %v649 = vmul.f32 %v647, 0.5
    %v650 = vtanh.pop %v649
    %v651 = vmul.f32 %v650, 0.5
    %v652 = vadd.f32 %v651, 0.5
    %v653 = vmul.f32 %v643, %v521
    %v654 = vmul.f32 %v636, %v646
    %v655 = vadd.f32 %v653, %v654
    %v656 = vtanh.pop %v655
    %v657 = vmul.f32 %v652, %v656
    %v659 = vrot.slane %v657, 1
    %v660 = vrot.slane %v657, 2
    %v661 = vrot.slane %v657, 3
    %v662 = vsel %vm255, %v657, %v659
    %v663 = vsel %vm257, %v660, %v661
    %v664 = vsel %vm218, %v662, %v663
    %v665 = vsel %vm260, %v657, %v659
    %v666 = vsel %vm262, %v660, %v661
    %v667 = vsel %vm264, %v665, %v666
    %v668 = vrot.slane %v667, 1
    %671 = vst [vmem:[#allocation9 + $0x3] sm:$0x1] %v664
    %672 = vst [vmem:[#allocation9 + $0xb] sm:$0x1] %v668
    %s673 = scalar_lea.vmem [#allocation4], 32
    %v674 = vld [vmem:[%s673] sm:$0xff]
    %675 = vmatpush.msra.mxu0 %v124
    %676 = vmatpush.msra.mxu0 %v120
    %677 = vmatpush.msra.mxu0 %v116
    %678 = vmatpush.msra.mxu0 %v112
    %679 = vmatpush.msra.mxu0 %v108
    %680 = vmatpush.msra.mxu0 %v104
    %681 = vmatpush.msra.mxu0 %v100
    %682 = vmatpush.msra.mxu0 %v96
    %683 = vmatpush.msra.mxu0 %v92
    %684 = vmatpush.msra.mxu0 %v88
    %685 = vmatpush.msra.mxu0 %v84
    %686 = vmatpush.msra.mxu0 %v80
    %687 = vmatpush.msra.mxu0 %v76
    %688 = vmatpush.msra.mxu0 %v72
    %689 = vmatpush.msra.mxu0 %v68
    %690 = vmatpush.msra.mxu0 %v64
    %691 = vmatmul.f32.gmra.mxu0 %v657
    %v692 = vpop.f32.mrf.mxu0
    %v693 = vadd.f32 0.0, %v692
    %694 = vdwg.mxu0
    %695 = vmatpush.msra.mxu0 %v125
    %696 = vmatpush.msra.mxu0 %v121
    %697 = vmatpush.msra.mxu0 %v117
    %698 = vmatpush.msra.mxu0 %v113
    %699 = vmatpush.msra.mxu0 %v109
    %700 = vmatpush.msra.mxu0 %v105
    %701 = vmatpush.msra.mxu0 %v101
    %702 = vmatpush.msra.mxu0 %v97
    %703 = vmatpush.msra.mxu0 %v93
    %704 = vmatpush.msra.mxu0 %v89
    %705 = vmatpush.msra.mxu0 %v85
    %706 = vmatpush.msra.mxu0 %v81
    %707 = vmatpush.msra.mxu0 %v77
    %708 = vmatpush.msra.mxu0 %v73
    %709 = vmatpush.msra.mxu0 %v69
    %710 = vmatpush.msra.mxu0 %v65
    %711 = vmatmul.f32.gmra.mxu0 %v657
    %v712 = vpop.f32.mrf.mxu0
    %v713 = vadd.f32 0.0, %v712
    %714 = vdwg.mxu0
    %715 = vmatpush.msra.mxu0 %v126
    %716 = vmatpush.msra.mxu0 %v122
    %717 = vmatpush.msra.mxu0 %v118
    %718 = vmatpush.msra.mxu0 %v114
    %719 = vmatpush.msra.mxu0 %v110
    %720 = vmatpush.msra.mxu0 %v106
    %721 = vmatpush.msra.mxu0 %v102
    %722 = vmatpush.msra.mxu0 %v98
    %723 = vmatpush.msra.mxu0 %v94
    %724 = vmatpush.msra.mxu0 %v90
    %725 = vmatpush.msra.mxu0 %v86
    %726 = vmatpush.msra.mxu0 %v82
    %727 = vmatpush.msra.mxu0 %v78
    %728 = vmatpush.msra.mxu0 %v74
    %729 = vmatpush.msra.mxu0 %v70
    %730 = vmatpush.msra.mxu0 %v66
    %731 = vmatmul.f32.gmra.mxu0 %v657
    %v732 = vpop.f32.mrf.mxu0
    %v733 = vadd.f32 0.0, %v732
    %734 = vdwg.mxu0
    %735 = vmatpush.msra.mxu0 %v127
    %736 = vmatpush.msra.mxu0 %v123
    %737 = vmatpush.msra.mxu0 %v119
    %738 = vmatpush.msra.mxu0 %v115
    %739 = vmatpush.msra.mxu0 %v111
    %740 = vmatpush.msra.mxu0 %v107
    %741 = vmatpush.msra.mxu0 %v103
    %742 = vmatpush.msra.mxu0 %v99
    %743 = vmatpush.msra.mxu0 %v95
    %744 = vmatpush.msra.mxu0 %v91
    %745 = vmatpush.msra.mxu0 %v87
    %746 = vmatpush.msra.mxu0 %v83
    %747 = vmatpush.msra.mxu0 %v79
    %748 = vmatpush.msra.mxu0 %v75
    %749 = vmatpush.msra.mxu0 %v71
    %750 = vmatpush.msra.mxu0 %v67
    %751 = vmatmul.f32.gmra.mxu0 %v657
    %v752 = vpop.f32.mrf.mxu0
    %v753 = vadd.f32 0.0, %v752
    %754 = vdwg.mxu0
    %v759 = vrot.slane %v713, 6
    %v760 = vrot.slane %v733, 4
    %v761 = vrot.slane %v753, 2
    %v762 = vsel %vm218, %v693, %v759
    %v763 = vsel %vm220, %v760, %v761
    %v764 = vsel %vm222, %v762, %v763
    %v766 = vadd.f32 %v674, %v764
    %v767 = vmul.f32 %v766, 0.5
    %v768 = vtanh.pop %v767
    %v769 = vmul.f32 %v768, 0.5
    %v770 = vadd.f32 %v769, 0.5
    %v772 = vrot.slane %v766, 2
    %v774 = vmul.f32 %v772, 0.5
    %v775 = vtanh.pop %v774
    %v776 = vmul.f32 %v775, 0.5
    %v777 = vadd.f32 %v776, 0.5
    %v778 = vrot.slane %v766, 4
    %v780 = vtanh.pop %v778
    %v781 = vrot.slane %v766, 6
    %v783 = vmul.f32 %v781, 0.5
    %v784 = vtanh.pop %v783
    %v785 = vmul.f32 %v784, 0.5
    %v786 = vadd.f32 %v785, 0.5
    %v787 = vmul.f32 %v777, %v655
    %v788 = vmul.f32 %v770, %v780
    %v789 = vadd.f32 %v787, %v788
    %v790 = vtanh.pop %v789
    %v791 = vmul.f32 %v786, %v790
    %v793 = vrot.slane %v791, 1
    %v794 = vrot.slane %v791, 2
    %v795 = vrot.slane %v791, 3
    %v796 = vsel %vm255, %v791, %v793
    %v797 = vsel %vm257, %v794, %v795
    %v798 = vsel %vm218, %v796, %v797
    %v799 = vsel %vm260, %v791, %v793
    %v800 = vsel %vm262, %v794, %v795
    %v801 = vsel %vm264, %v799, %v800
    %v802 = vrot.slane %v801, 1
    %805 = vst [vmem:[#allocation9 + $0x4] sm:$0x1] %v798
    %806 = vst [vmem:[#allocation9 + $0xc] sm:$0x1] %v802
    %s807 = scalar_lea.vmem [#allocation4], 40
    %v808 = vld [vmem:[%s807] sm:$0xff]
    %809 = vmatpush.msra.mxu0 %v124
    %810 = vmatpush.msra.mxu0 %v120
    %811 = vmatpush.msra.mxu0 %v116
    %812 = vmatpush.msra.mxu0 %v112
    %813 = vmatpush.msra.mxu0 %v108
    %814 = vmatpush.msra.mxu0 %v104
    %815 = vmatpush.msra.mxu0 %v100
    %816 = vmatpush.msra.mxu0 %v96
    %817 = vmatpush.msra.mxu0 %v92
    %818 = vmatpush.msra.mxu0 %v88
    %819 = vmatpush.msra.mxu0 %v84
    %820 = vmatpush.msra.mxu0 %v80
    %821 = vmatpush.msra.mxu0 %v76
    %822 = vmatpush.msra.mxu0 %v72
    %823 = vmatpush.msra.mxu0 %v68
    %824 = vmatpush.msra.mxu0 %v64
    %825 = vmatmul.f32.gmra.mxu0 %v791
    %v826 = vpop.f32.mrf.mxu0
    %v827 = vadd.f32 0.0, %v826
    %828 = vdwg.mxu0
    %829 = vmatpush.msra.mxu0 %v125
    %830 = vmatpush.msra.mxu0 %v121
    %831 = vmatpush.msra.mxu0 %v117
    %832 = vmatpush.msra.mxu0 %v113
    %833 = vmatpush.msra.mxu0 %v109
    %834 = vmatpush.msra.mxu0 %v105
    %835 = vmatpush.msra.mxu0 %v101
    %836 = vmatpush.msra.mxu0 %v97
    %837 = vmatpush.msra.mxu0 %v93
    %838 = vmatpush.msra.mxu0 %v89
    %839 = vmatpush.msra.mxu0 %v85
    %840 = vmatpush.msra.mxu0 %v81
    %841 = vmatpush.msra.mxu0 %v77
    %842 = vmatpush.msra.mxu0 %v73
    %843 = vmatpush.msra.mxu0 %v69
    %844 = vmatpush.msra.mxu0 %v65
    %845 = vmatmul.f32.gmra.mxu0 %v791
    %v846 = vpop.f32.mrf.mxu0
    %v847 = vadd.f32 0.0, %v846
    %848 = vdwg.mxu0
    %849 = vmatpush.msra.mxu0 %v126
    %850 = vmatpush.msra.mxu0 %v122
    %851 = vmatpush.msra.mxu0 %v118
    %852 = vmatpush.msra.mxu0 %v114
    %853 = vmatpush.msra.mxu0 %v110
    %854 = vmatpush.msra.mxu0 %v106
    %855 = vmatpush.msra.mxu0 %v102
    %856 = vmatpush.msra.mxu0 %v98
    %857 = vmatpush.msra.mxu0 %v94
    %858 = vmatpush.msra.mxu0 %v90
    %859 = vmatpush.msra.mxu0 %v86
    %860 = vmatpush.msra.mxu0 %v82
    %861 = vmatpush.msra.mxu0 %v78
    %862 = vmatpush.msra.mxu0 %v74
    %863 = vmatpush.msra.mxu0 %v70
    %864 = vmatpush.msra.mxu0 %v66
    %865 = vmatmul.f32.gmra.mxu0 %v791
    %v866 = vpop.f32.mrf.mxu0
    %v867 = vadd.f32 0.0, %v866
    %868 = vdwg.mxu0
    %869 = vmatpush.msra.mxu0 %v127
    %870 = vmatpush.msra.mxu0 %v123
    %871 = vmatpush.msra.mxu0 %v119
    %872 = vmatpush.msra.mxu0 %v115
    %873 = vmatpush.msra.mxu0 %v111
    %874 = vmatpush.msra.mxu0 %v107
    %875 = vmatpush.msra.mxu0 %v103
    %876 = vmatpush.msra.mxu0 %v99
    %877 = vmatpush.msra.mxu0 %v95
    %878 = vmatpush.msra.mxu0 %v91
    %879 = vmatpush.msra.mxu0 %v87
    %880 = vmatpush.msra.mxu0 %v83
    %881 = vmatpush.msra.mxu0 %v79
    %882 = vmatpush.msra.mxu0 %v75
    %883 = vmatpush.msra.mxu0 %v71
    %884 = vmatpush.msra.mxu0 %v67
    %885 = vmatmul.f32.gmra.mxu0 %v791
    %v886 = vpop.f32.mrf.mxu0
    %v887 = vadd.f32 0.0, %v886
    %888 = vdwg.mxu0
    %v893 = vrot.slane %v847, 6
    %v894 = vrot.slane %v867, 4
    %v895 = vrot.slane %v887, 2
    %v896 = vsel %vm218, %v827, %v893
    %v897 = vsel %vm220, %v894, %v895
    %v898 = vsel %vm222, %v896, %v897
    %v900 = vadd.f32 %v808, %v898
    %v901 = vmul.f32 %v900, 0.5
    %v902 = vtanh.pop %v901
    %v903 = vmul.f32 %v902, 0.5
    %v904 = vadd.f32 %v903, 0.5
    %v906 = vrot.slane %v900, 2
    %v908 = vmul.f32 %v906, 0.5
    %v909 = vtanh.pop %v908
    %v910 = vmul.f32 %v909, 0.5
    %v911 = vadd.f32 %v910, 0.5
    %v912 = vrot.slane %v900, 4
    %v914 = vtanh.pop %v912
    %v915 = vrot.slane %v900, 6
    %v917 = vmul.f32 %v915, 0.5
    %v918 = vtanh.pop %v917
    %v919 = vmul.f32 %v918, 0.5
    %v920 = vadd.f32 %v919, 0.5
    %v921 = vmul.f32 %v911, %v789
    %v922 = vmul.f32 %v904, %v914
    %v923 = vadd.f32 %v921, %v922
    %v924 = vtanh.pop %v923
    %v925 = vmul.f32 %v920, %v924
    %v927 = vrot.slane %v925, 1
    %v928 = vrot.slane %v925, 2
    %v929 = vrot.slane %v925, 3
    %v930 = vsel %vm255, %v925, %v927
    %v931 = vsel %vm257, %v928, %v929
    %v932 = vsel %vm218, %v930, %v931
    %v933 = vsel %vm260, %v925, %v927
    %v934 = vsel %vm262, %v928, %v929
    %v935 = vsel %vm264, %v933, %v934
    %v936 = vrot.slane %v935, 1
    %939 = vst [vmem:[#allocation9 + $0x5] sm:$0x1] %v932
    %940 = vst [vmem:[#allocation9 + $0xd] sm:$0x1] %v936
    %s941 = scalar_lea.vmem [#allocation4], 48
    %v942 = vld [vmem:[%s941] sm:$0xff]
    %943 = vmatpush.msra.mxu0 %v124
    %944 = vmatpush.msra.mxu0 %v120
    %945 = vmatpush.msra.mxu0 %v116
    %946 = vmatpush.msra.mxu0 %v112
    %947 = vmatpush.msra.mxu0 %v108
    %948 = vmatpush.msra.mxu0 %v104
    %949 = vmatpush.msra.mxu0 %v100
    %950 = vmatpush.msra.mxu0 %v96
    %951 = vmatpush.msra.mxu0 %v92
    %952 = vmatpush.msra.mxu0 %v88
    %953 = vmatpush.msra.mxu0 %v84
    %954 = vmatpush.msra.mxu0 %v80
    %955 = vmatpush.msra.mxu0 %v76
    %956 = vmatpush.msra.mxu0 %v72
    %957 = vmatpush.msra.mxu0 %v68
    %958 = vmatpush.msra.mxu0 %v64
    %959 = vmatmul.f32.gmra.mxu0 %v925
    %v960 = vpop.f32.mrf.mxu0
    %v961 = vadd.f32 0.0, %v960
    %962 = vdwg.mxu0
    %963 = vmatpush.msra.mxu0 %v125
    %964 = vmatpush.msra.mxu0 %v121
    %965 = vmatpush.msra.mxu0 %v117
    %966 = vmatpush.msra.mxu0 %v113
    %967 = vmatpush.msra.mxu0 %v109
    %968 = vmatpush.msra.mxu0 %v105
    %969 = vmatpush.msra.mxu0 %v101
    %970 = vmatpush.msra.mxu0 %v97
    %971 = vmatpush.msra.mxu0 %v93
    %972 = vmatpush.msra.mxu0 %v89
    %973 = vmatpush.msra.mxu0 %v85
    %974 = vmatpush.msra.mxu0 %v81
    %975 = vmatpush.msra.mxu0 %v77
    %976 = vmatpush.msra.mxu0 %v73
    %977 = vmatpush.msra.mxu0 %v69
    %978 = vmatpush.msra.mxu0 %v65
    %979 = vmatmul.f32.gmra.mxu0 %v925
    %v980 = vpop.f32.mrf.mxu0
    %v981 = vadd.f32 0.0, %v980
    %982 = vdwg.mxu0
    %983 = vmatpush.msra.mxu0 %v126
    %984 = vmatpush.msra.mxu0 %v122
    %985 = vmatpush.msra.mxu0 %v118
    %986 = vmatpush.msra.mxu0 %v114
    %987 = vmatpush.msra.mxu0 %v110
    %988 = vmatpush.msra.mxu0 %v106
    %989 = vmatpush.msra.mxu0 %v102
    %990 = vmatpush.msra.mxu0 %v98
    %991 = vmatpush.msra.mxu0 %v94
    %992 = vmatpush.msra.mxu0 %v90
    %993 = vmatpush.msra.mxu0 %v86
    %994 = vmatpush.msra.mxu0 %v82
    %995 = vmatpush.msra.mxu0 %v78
    %996 = vmatpush.msra.mxu0 %v74
    %997 = vmatpush.msra.mxu0 %v70
    %998 = vmatpush.msra.mxu0 %v66
    %999 = vmatmul.f32.gmra.mxu0 %v925
    %v1000 = vpop.f32.mrf.mxu0
    %v1001 = vadd.f32 0.0, %v1000
    %1002 = vdwg.mxu0
    %1003 = vmatpush.msra.mxu0 %v127
    %1004 = vmatpush.msra.mxu0 %v123
    %1005 = vmatpush.msra.mxu0 %v119
    %1006 = vmatpush.msra.mxu0 %v115
    %1007 = vmatpush.msra.mxu0 %v111
    %1008 = vmatpush.msra.mxu0 %v107
    %1009 = vmatpush.msra.mxu0 %v103
    %1010 = vmatpush.msra.mxu0 %v99
    %1011 = vmatpush.msra.mxu0 %v95
    %1012 = vmatpush.msra.mxu0 %v91
    %1013 = vmatpush.msra.mxu0 %v87
    %1014 = vmatpush.msra.mxu0 %v83
    %1015 = vmatpush.msra.mxu0 %v79
    %1016 = vmatpush.msra.mxu0 %v75
    %1017 = vmatpush.msra.mxu0 %v71
    %1018 = vmatpush.msra.mxu0 %v67
    %1019 = vmatmul.f32.gmra.mxu0 %v925
    %v1020 = vpop.f32.mrf.mxu0
    %v1021 = vadd.f32 0.0, %v1020
    %1022 = vdwg.mxu0
    %v1027 = vrot.slane %v981, 6
    %v1028 = vrot.slane %v1001, 4
    %v1029 = vrot.slane %v1021, 2
    %v1030 = vsel %vm218, %v961, %v1027
    %v1031 = vsel %vm220, %v1028, %v1029
    %v1032 = vsel %vm222, %v1030, %v1031
    %v1034 = vadd.f32 %v942, %v1032
    %v1035 = vmul.f32 %v1034, 0.5
    %v1036 = vtanh.pop %v1035
    %v1037 = vmul.f32 %v1036, 0.5
    %v1038 = vadd.f32 %v1037, 0.5
    %v1040 = vrot.slane %v1034, 2
    %v1042 = vmul.f32 %v1040, 0.5
    %v1043 = vtanh.pop %v1042
    %v1044 = vmul.f32 %v1043, 0.5
    %v1045 = vadd.f32 %v1044, 0.5
    %v1046 = vrot.slane %v1034, 4
    %v1048 = vtanh.pop %v1046
    %v1049 = vrot.slane %v1034, 6
    %v1051 = vmul.f32 %v1049, 0.5
    %v1052 = vtanh.pop %v1051
    %v1053 = vmul.f32 %v1052, 0.5
    %v1054 = vadd.f32 %v1053, 0.5
    %v1055 = vmul.f32 %v1045, %v923
    %v1056 = vmul.f32 %v1038, %v1048
    %v1057 = vadd.f32 %v1055, %v1056
    %v1058 = vtanh.pop %v1057
    %v1059 = vmul.f32 %v1054, %v1058
    %v1061 = vrot.slane %v1059, 1
    %v1062 = vrot.slane %v1059, 2
    %v1063 = vrot.slane %v1059, 3
    %v1064 = vsel %vm255, %v1059, %v1061
    %v1065 = vsel %vm257, %v1062, %v1063
    %v1066 = vsel %vm218, %v1064, %v1065
    %v1067 = vsel %vm260, %v1059, %v1061
    %v1068 = vsel %vm262, %v1062, %v1063
    %v1069 = vsel %vm264, %v1067, %v1068
    %v1070 = vrot.slane %v1069, 1
    %1073 = vst [vmem:[#allocation9 + $0x6] sm:$0x1] %v1066
    %1074 = vst [vmem:[#allocation9 + $0xe] sm:$0x1] %v1070
    %s1075 = scalar_lea.vmem [#allocation4], 56
    %v1076 = vld [vmem:[%s1075] sm:$0xff]
    %1077 = vmatpush.msra.mxu0 %v124
    %1078 = vmatpush.msra.mxu0 %v120
    %1079 = vmatpush.msra.mxu0 %v116
    %1080 = vmatpush.msra.mxu0 %v112
    %1081 = vmatpush.msra.mxu0 %v108
    %1082 = vmatpush.msra.mxu0 %v104
    %1083 = vmatpush.msra.mxu0 %v100
    %1084 = vmatpush.msra.mxu0 %v96
    %1085 = vmatpush.msra.mxu0 %v92
    %1086 = vmatpush.msra.mxu0 %v88
    %1087 = vmatpush.msra.mxu0 %v84
    %1088 = vmatpush.msra.mxu0 %v80
    %1089 = vmatpush.msra.mxu0 %v76
    %1090 = vmatpush.msra.mxu0 %v72
    %1091 = vmatpush.msra.mxu0 %v68
    %1092 = vmatpush.msra.mxu0 %v64
    %1093 = vmatmul.f32.gmra.mxu0 %v1059
    %v1094 = vpop.f32.mrf.mxu0
    %v1095 = vadd.f32 0.0, %v1094
    %1096 = vdwg.mxu0
    %1097 = vmatpush.msra.mxu0 %v125
    %1098 = vmatpush.msra.mxu0 %v121
    %1099 = vmatpush.msra.mxu0 %v117
    %1100 = vmatpush.msra.mxu0 %v113
    %1101 = vmatpush.msra.mxu0 %v109
    %1102 = vmatpush.msra.mxu0 %v105
    %1103 = vmatpush.msra.mxu0 %v101
    %1104 = vmatpush.msra.mxu0 %v97
    %1105 = vmatpush.msra.mxu0 %v93
    %1106 = vmatpush.msra.mxu0 %v89
    %1107 = vmatpush.msra.mxu0 %v85
    %1108 = vmatpush.msra.mxu0 %v81
    %1109 = vmatpush.msra.mxu0 %v77
    %1110 = vmatpush.msra.mxu0 %v73
    %1111 = vmatpush.msra.mxu0 %v69
    %1112 = vmatpush.msra.mxu0 %v65
    %1113 = vmatmul.f32.gmra.mxu0 %v1059
    %v1114 = vpop.f32.mrf.mxu0
    %v1115 = vadd.f32 0.0, %v1114
    %1116 = vdwg.mxu0
    %1117 = vmatpush.msra.mxu0 %v126
    %1118 = vmatpush.msra.mxu0 %v122
    %1119 = vmatpush.msra.mxu0 %v118
    %1120 = vmatpush.msra.mxu0 %v114
    %1121 = vmatpush.msra.mxu0 %v110
    %1122 = vmatpush.msra.mxu0 %v106
    %1123 = vmatpush.msra.mxu0 %v102
    %1124 = vmatpush.msra.mxu0 %v98
    %1125 = vmatpush.msra.mxu0 %v94
    %1126 = vmatpush.msra.mxu0 %v90
    %1127 = vmatpush.msra.mxu0 %v86
    %1128 = vmatpush.msra.mxu0 %v82
    %1129 = vmatpush.msra.mxu0 %v78
    %1130 = vmatpush.msra.mxu0 %v74
    %1131 = vmatpush.msra.mxu0 %v70
    %1132 = vmatpush.msra.mxu0 %v66
    %1133 = vmatmul.f32.gmra.mxu0 %v1059
    %v1134 = vpop.f32.mrf.mxu0
    %v1135 = vadd.f32 0.0, %v1134
    %1136 = vdwg.mxu0
    %1137 = vmatpush.msra.mxu0 %v127
    %1138 = vmatpush.msra.mxu0 %v123
    %1139 = vmatpush.msra.mxu0 %v119
    %1140 = vmatpush.msra.mxu0 %v115
    %1141 = vmatpush.msra.mxu0 %v111
    %1142 = vmatpush.msra.mxu0 %v107
    %1143 = vmatpush.msra.mxu0 %v103
    %1144 = vmatpush.msra.mxu0 %v99
    %1145 = vmatpush.msra.mxu0 %v95
    %1146 = vmatpush.msra.mxu0 %v91
    %1147 = vmatpush.msra.mxu0 %v87
    %1148 = vmatpush.msra.mxu0 %v83
    %1149 = vmatpush.msra.mxu0 %v79
    %1150 = vmatpush.msra.mxu0 %v75
    %1151 = vmatpush.msra.mxu0 %v71
    %1152 = vmatpush.msra.mxu0 %v67
    %1153 = vmatmul.f32.gmra.mxu0 %v1059
    %v1154 = vpop.f32.mrf.mxu0
    %v1155 = vadd.f32 0.0, %v1154
    %1156 = vdwg.mxu0
    %v1161 = vrot.slane %v1115, 6
    %v1162 = vrot.slane %v1135, 4
    %v1163 = vrot.slane %v1155, 2
    %v1164 = vsel %vm218, %v1095, %v1161
    %v1165 = vsel %vm220, %v1162, %v1163
    %v1166 = vsel %vm222, %v1164, %v1165
    %v1168 = vadd.f32 %v1076, %v1166
    %v1169 = vmul.f32 %v1168, 0.5
    %v1170 = vtanh.pop %v1169
    %v1171 = vmul.f32 %v1170, 0.5
    %v1172 = vadd.f32 %v1171, 0.5
    %v1174 = vrot.slane %v1168, 2
    %v1176 = vmul.f32 %v1174, 0.5
    %v1177 = vtanh.pop %v1176
    %v1178 = vmul.f32 %v1177, 0.5
    %v1179 = vadd.f32 %v1178, 0.5
    %v1180 = vrot.slane %v1168, 4
    %v1182 = vtanh.pop %v1180
    %v1183 = vrot.slane %v1168, 6
    %v1185 = vmul.f32 %v1183, 0.5
    %v1186 = vtanh.pop %v1185
    %v1187 = vmul.f32 %v1186, 0.5
    %v1188 = vadd.f32 %v1187, 0.5
    %v1189 = vmul.f32 %v1179, %v1057
    %v1190 = vmul.f32 %v1172, %v1182
    %v1191 = vadd.f32 %v1189, %v1190
    %v1192 = vtanh.pop %v1191
    %v1193 = vmul.f32 %v1188, %v1192
    %v1195 = vrot.slane %v1193, 1
    %v1196 = vrot.slane %v1193, 2
    %v1197 = vrot.slane %v1193, 3
    %v1198 = vsel %vm255, %v1193, %v1195
    %v1199 = vsel %vm257, %v1196, %v1197
    %v1200 = vsel %vm218, %v1198, %v1199
    %v1201 = vsel %vm260, %v1193, %v1195
    %v1202 = vsel %vm262, %v1196, %v1197
    %v1203 = vsel %vm264, %v1201, %v1202
    %v1204 = vrot.slane %v1203, 1
    %1207 = vst [vmem:[#allocation9 + $0x7] sm:$0x1] %v1200
    %1208 = vst [vmem:[#allocation9 + $0xf] sm:$0x1] %v1204
    %1209 = vst [vmem:[#allocation2] sm:$0x3] %v1193
    %1210 = vst [vmem:[#allocation3] sm:$0x3] %v1191
    // Predicated region
    $region30: #{tpu_custom_call.1} parent=1 // pred_check
      _
    $region31: #{tpu_custom_call.1} parent=1 // pred_check_branch
      %1212 = sbr.rel (0) target = $region33
    $region32: #{tpu_custom_call.1} parent=1 // pred_region
      %1214 = vsyncadd [#allocation6], 0
      %s1215 = sshll.u32 [#allocation9], 4
      %s1216 = int_to_ptr.vmem [resolvable:$true] %s1215
      %s1217 = sshll.u32 %s4, 4
      %s1218 = int_to_ptr.hbm [resolvable:$true] %s1217
      %1223 = dma.vmem_to_hbm [thread:$0]  %s1216, 256, %s1218, [#allocation6], 128, 128, 8
    $region33: #{tpu_custom_call.1} parent=1 // pred_fallthru
      _
    // Predicated region
    $region34: #{tpu_custom_call.1} parent=1 // pred_check
      _
    $region35: #{tpu_custom_call.1} parent=1 // pred_check_branch
      %1225 = sbr.rel (0) target = $region37
    $region36: #{tpu_custom_call.1} parent=1 // pred_region
      %1227 = dma.done [#allocation6], 256
    $region37: #{tpu_custom_call.1} parent=1 // pred_fallthru
      _
    %1228 = vsyncpa [#allocation5], 1
    %1229 = vsyncpa [#allocation8], 1
    %1230 = vsyncpa [#allocation6], 1

</llo_original>
